<compile_context>
chip_gen: v7x
topology: tpu7x:2x2x1
jax: 0.10.0
libtpu: 0.0.40
codegen_flags: <defaults>
</compile_context>

<pallas_src>
import functools

import jax
import jax.numpy as jnp
from jax.experimental import pallas as pl
from jax.experimental.pallas import tpu as pltpu


def _layer_norm(x, gamma, beta, eps=1e-5):
    # x: (T, C) float32; gamma/beta: (1, C).  PyTorch LayerNorm (biased variance).
    mu = jnp.mean(x, axis=-1, keepdims=True)
    var = jnp.mean((x - mu) ** 2, axis=-1, keepdims=True)
    return (x - mu) * jax.lax.rsqrt(var + eps) * gamma + beta


def _split_heads(t2d, num_heads):
    # (T, C) -> (H, T, Ch) via static lane slices (free when Ch % 128 == 0).
    t, c = t2d.shape
    ch = c // num_heads
    return jnp.stack([t2d[:, h * ch:(h + 1) * ch] for h in range(num_heads)], axis=0)


def _merge_heads(t3d):
    # (H, T, Ch) -> (T, H*Ch), matching PyTorch's 'b h n c -> b n (h c)' concat order.
    h = t3d.shape[0]
    return jnp.concatenate([t3d[i] for i in range(h)], axis=-1)


# --------------------------------------------------------------------------------------
# Path A: module-faithful kernel (returns attention probabilities).  Full M per block.
# --------------------------------------------------------------------------------------
def _transformer_attn_kernel(
    x_ref, mem_ref, wq_ref, bq_ref, wkv_ref, bkv_ref, wo_ref, bo_ref,
    g1_ref, be1_ref, w1_ref, b1_ref, w2_ref, b2_ref, g2_ref, be2_ref,
    out_ref, attn_ref, *, num_heads, scale,
):
    f32 = jnp.float32
    x = x_ref[0]                                # (TQ, C)   compute dtype (f32 / bf16)
    mem = mem_ref[0]                            # (M,  C)
    cdt = x.dtype
    _, c = x.shape

    # Q and fused-KV projections: full-width 2D MXU matmuls, no activation broadcast.
    q2 = jnp.dot(x, wq_ref[...], preferred_element_type=f32) + bq_ref[...]       # (TQ, C)
    kv = jnp.dot(mem, wkv_ref[...], preferred_element_type=f32) + bkv_ref[...]   # (M, 2C)
    # Fold 1/sqrt(Ch) into q once (note: with bf16 compute this rounds slightly
    # differently than scaling the f32 scores).
    q2 = (q2 * scale).astype(cdt)
    k2 = kv[:, :c].astype(cdt)
    v2 = kv[:, c:].astype(cdt)

    q = _split_heads(q2, num_heads)             # (H, TQ, Ch)
    k = _split_heads(k2, num_heads)             # (H, M,  Ch)
    v = _split_heads(v2, num_heads)             # (H, M,  Ch)

    # Scores + softmax in f32; contraction over the last dims (no explicit k.T).
    s = jnp.einsum('hnd,hmd->hnm', q, k, preferred_element_type=f32)   # (H, TQ, M)
    s = s - jnp.max(s, axis=-1, keepdims=True)
    e = jnp.exp(s)
    # Exact normalization: these probabilities are a module output.
    p = e / jnp.sum(e, axis=-1, keepdims=True)
    attn_ref[0] = p.astype(attn_ref.dtype)

    # Context per head, then a single head-merged output projection (K = H*Ch = C).
    ctx = jnp.einsum('hnm,hmd->hnd', p.astype(cdt), v, preferred_element_type=f32)
    hid = jnp.dot(_merge_heads(ctx.astype(cdt)), wo_ref[...],
                  preferred_element_type=f32) + bo_ref[...]            # (TQ, C)

    # Attention residual + LayerNorm (f32).
    a_out = _layer_norm(hid + x.astype(f32), g1_ref[...], be1_ref[...])

    # FFN: expand -> ReLU -> squeeze -> residual + LayerNorm.
    h1 = jnp.dot(a_out.astype(cdt), w1_ref[...], preferred_element_type=f32) + b1_ref[...]
    h1 = jnp.maximum(h1, 0.0)
    h2 = jnp.dot(h1.astype(cdt), w2_ref[...], preferred_element_type=f32) + b2_ref[...]
    out_ref[0] = _layer_norm(a_out + h2, g2_ref[...], be2_ref[...]).astype(out_ref.dtype)


# --------------------------------------------------------------------------------------
# Path B: flash kernel (no attention output).  Grid axis over M tiles ("arbitrary",
# last), online softmax in VMEM scratch; epilogue (out-proj/LN/FFN/LN) at the last tile.
# --------------------------------------------------------------------------------------
def _transformer_flash_kernel(
    x_ref, mem_ref, wq_ref, bq_ref, wkv_ref, bkv_ref, wo_ref, bo_ref,
    g1_ref, be1_ref, w1_ref, b1_ref, w2_ref, b2_ref, g2_ref, be2_ref,
    out_ref, q_sc, m_sc, l_sc, acc_sc, *, num_heads, scale,
):
    f32 = jnp.float32
    mi = pl.program_id(2)
    x = x_ref[0]                                # (TQ, C)
    mem = mem_ref[0]                            # (TM, C)  current key/value tile
    cdt = x.dtype
    _, c = x.shape

    @pl.when(mi == 0)
    def _init():
        q2 = jnp.dot(x, wq_ref[...], preferred_element_type=f32) + bq_ref[...]
        q_sc[...] = _split_heads((q2 * scale).astype(cdt), num_heads)   # (H, TQ, Ch)
        m_sc[...] = jnp.full(m_sc.shape, -jnp.inf, f32)
        l_sc[...] = jnp.zeros(l_sc.shape, f32)
        acc_sc[...] = jnp.zeros(acc_sc.shape, f32)

    # Fused K/V projection of this mem tile (recomputed per query-row tile).
    kv = jnp.dot(mem, wkv_ref[...], preferred_element_type=f32) + bkv_ref[...]   # (TM, 2C)
    k = _split_heads(kv[:, :c].astype(cdt), num_heads)     # (H, TM, Ch)
    v = _split_heads(kv[:, c:].astype(cdt), num_heads)     # (H, TM, Ch)

    s = jnp.einsum('hnd,hmd->hnm', q_sc[...], k, preferred_element_type=f32)     # (H, TQ, TM)
    m_prev = m_sc[...]
    m_new = jnp.maximum(m_prev, jnp.max(s, axis=-1, keepdims=True))
    alpha = jnp.exp(m_prev - m_new)
    p = jnp.exp(s - m_new)
    l_sc[...] = alpha * l_sc[...] + jnp.sum(p, axis=-1, keepdims=True)
    acc_sc[...] = alpha * acc_sc[...] + jnp.einsum(
        'hnm,hmd->hnd', p.astype(cdt), v, preferred_element_type=f32)
    m_sc[...] = m_new

    @pl.when(mi == pl.num_programs(2) - 1)
    def _finalize():
        # approx reciprocal OK here: probabilities are not emitted.
        ctx = acc_sc[...] * pl.reciprocal(l_sc[...], approx=True)       # (H, TQ, Ch)
        hid = jnp.dot(_merge_heads(ctx.astype(cdt)), wo_ref[...],
                      preferred_element_type=f32) + bo_ref[...]
        a_out = _layer_norm(hid + x.astype(f32), g1_ref[...], be1_ref[...])
        h1 = jnp.dot(a_out.astype(cdt), w1_ref[...], preferred_element_type=f32) + b1_ref[...]
        h1 = jnp.maximum(h1, 0.0)
        h2 = jnp.dot(h1.astype(cdt), w2_ref[...], preferred_element_type=f32) + b2_ref[...]
        out_ref[0] = _layer_norm(a_out + h2, g2_ref[...], be2_ref[...]).astype(out_ref.dtype)


# --------------------------------------------------------------------------------------
# Wrapper
# --------------------------------------------------------------------------------------
def transformer_layer(x, mem, params, num_heads, *,
                      q_tile=256, kv_tile=1024,
                      compute_dtype=None, attn_dtype=None,
                      return_attention=True, vmem_limit_bytes=None):
    """Fused TransformerLayer forward.

    q_tile: 256 on v6e (raise vmem_limit_bytes); 128 on v5e / v7x (tighter VMEM).
    attn_dtype: use jnp.bfloat16 at scale if the probabilities are needed; use
      return_attention=False (flash path) if they are not.
    compute_dtype: pass jnp.bfloat16 at scale for MXU throughput (accumulation stays f32).
    """
    (wq, bq, wk, bk, wv, bv, wo, bo, g1, be1, w1, b1, w2, b2, g2, be2) = params
    B, N, C = x.shape
    M = mem.shape[1]
    H = num_heads
    assert C % H == 0
    Ch = C // H

    f32 = jnp.float32
    cdt = compute_dtype if compute_dtype is not None else x.dtype
    adt = attn_dtype if attn_dtype is not None else x.dtype

    # Fuse K and V projection weights -> one pass over mem with a 2x wider MXU RHS.
    wkv = jnp.concatenate([wk, wv], axis=1)      # (C, 2C)
    bkv = jnp.concatenate([bk, bv], axis=1)      # (1, 2C)

    cast = lambda a: a.astype(cdt)
    inputs = (
        cast(x), cast(mem),
        cast(wq), bq.astype(f32), cast(wkv), bkv.astype(f32),
        cast(wo), bo.astype(f32), g1.astype(f32), be1.astype(f32),
        cast(w1), b1.astype(f32), cast(w2), b2.astype(f32),
        g2.astype(f32), be2.astype(f32),
    )

    tq = min(N, q_tile)
    assert N % tq == 0, "N must be a multiple of q_tile"
    ntq = N // tq
    scale = 1.0 / (Ch ** 0.5)

    cp_kwargs = {}
    if vmem_limit_bytes is not None:
        cp_kwargs["vmem_limit_bytes"] = vmem_limit_bytes

    # Grid-invariant weight/bias blocks (index map constant).  Pallas skips the re-DMA
    # when the block index does not change between grid steps.
    weight_shapes = [
        (C, C), (1, C),            # wq, bq
        (C, 2 * C), (1, 2 * C),    # wkv, bkv
        (C, C), (1, C),            # wo, bo
        (1, C), (1, C),            # ln1 gamma, beta
        (C, 2 * C), (1, 2 * C),    # expand
        (2 * C, C), (1, C),        # squeeze
        (1, C), (1, C),            # ln2 gamma, beta
    ]

    if return_attention:
        # Module-faithful path: the (H, TQ, M) softmax block is materialized because the
        # probabilities are an output of the module.
        def wspec(shape):
            zeros = (0,) * len(shape)
            def imap(b, qi):
                return zeros
            return pl.BlockSpec(shape, imap)

        in_specs = [
            pl.BlockSpec((1, tq, C), lambda b, qi: (b, qi, 0)),   # x row tile
            pl.BlockSpec((1, M, C), lambda b, qi: (b, 0, 0)),     # full mem sequence
        ] + [wspec(s) for s in weight_shapes]
        out_specs = [
            pl.BlockSpec((1, tq, C), lambda b, qi: (b, qi, 0)),
            pl.BlockSpec((1, H, tq, M), lambda b, qi: (b, 0, qi, 0)),
        ]
        out_shape = [
            jax.ShapeDtypeStruct((B, N, C), x.dtype),
            jax.ShapeDtypeStruct((B, H, N, M), adt),
        ]
        kernel = functools.partial(_transformer_attn_kernel, num_heads=H, scale=scale)
        out, attn = pl.pallas_call(
            kernel,
            grid=(B, ntq),
            in_specs=in_specs,
            out_specs=out_specs,
            out_shape=out_shape,
            compiler_params=pltpu.CompilerParams(
                dimension_semantics=("parallel", "parallel"), **cp_kwargs),
        )(*inputs)
        return out, attn

    # Flash path: M is tiled on the last ("arbitrary") grid axis; no attention output.
    tm = min(M, kv_tile)
    assert M % tm == 0, "M must be a multiple of kv_tile"
    ntm = M // tm

    def wspec3(shape):
        zeros = (0,) * len(shape)
        def imap(b, qi, mi):
            return zeros
        return pl.BlockSpec(shape, imap)

    in_specs = [
        pl.BlockSpec((1, tq, C), lambda b, qi, mi: (b, qi, 0)),   # x (resident over mi)
        pl.BlockSpec((1, tm, C), lambda b, qi, mi: (b, mi, 0)),   # mem tile
    ] + [wspec3(s) for s in weight_shapes]
    out_specs = pl.BlockSpec((1, tq, C), lambda b, qi, mi: (b, qi, 0))
    out_shape = jax.ShapeDtypeStruct((B, N, C), x.dtype)
    kernel = functools.partial(_transformer_flash_kernel, num_heads=H, scale=scale)
    out = pl.pallas_call(
        kernel,
        grid=(B, ntq, ntm),
        in_specs=in_specs,
        out_specs=out_specs,
        out_shape=out_shape,
        scratch_shapes=[
            pltpu.VMEM((H, tq, Ch), cdt),          # projected q
            pltpu.VMEM((H, tq, 1), jnp.float32),   # running max
            pltpu.VMEM((H, tq, 1), jnp.float32),   # running denom
            pltpu.VMEM((H, tq, Ch), jnp.float32),  # context accumulator
        ],
        compiler_params=pltpu.CompilerParams(
            dimension_semantics=("parallel", "parallel", "arbitrary"), **cp_kwargs),
    )(*inputs)
    return out


# --------------------------------------------------------------------------------------
# Pure-JAX reference (mirrors the PyTorch module forward, dropout=None, masks=None)
# --------------------------------------------------------------------------------------
def reference_forward(x, mem, params, num_heads):
    (wq, bq, wk, bk, wv, bv, wo, bo, g1, be1, w1, b1, w2, b2, g2, be2) = params
    B, N, C = x.shape
    M = mem.shape[1]
    H = num_heads
    Ch = C // H

    q = (x @ wq + bq).reshape(B, N, H, Ch).transpose(0, 2, 1, 3)
    k = (mem @ wk + bk).reshape(B, M, H, Ch).transpose(0, 2, 1, 3)
    v = (mem @ wv + bv).reshape(B, M, H, Ch).transpose(0, 2, 1, 3)
    scores = jnp.einsum('bhnc,bhmc->bhnm', q, k) / (Ch ** 0.5)
    attn = jax.nn.softmax(scores, axis=-1)
    hid = jnp.einsum('bhnm,bhmc->bhnc', attn, v).transpose(0, 2, 1, 3).reshape(B, N, C)
    hid = hid @ wo + bo

    def ln(t, g, b):
        mu = jnp.mean(t, -1, keepdims=True)
        var = jnp.mean((t - mu) ** 2, -1, keepdims=True)
        return (t - mu) / jnp.sqrt(var + 1e-5) * g + b

    a_out = ln(hid + x, g1, be1)
    ff = jnp.maximum(a_out @ w1 + b1, 0.0) @ w2 + b2
    return ln(a_out + ff, g2, be2), attn


if __name__ == "__main__":
    # Toy shapes (see review: benchmark only at C>=512, M multiple of 128; these shapes
    # are for correctness only).
    B, N, M, C, H = 2, 8, 16, 32, 4

    key = jax.random.PRNGKey(0)
    keys = jax.random.split(key, 16)

    def init(k, shape, scl=0.1):
        return jax.random.normal(k, shape, jnp.float32) * scl

    x = init(keys[0], (B, N, C), 1.0)
    mem = init(keys[1], (B, M, C), 1.0)

    params = (
        init(keys[2], (C, C)), init(keys[3], (1, C)),                    # q proj
        init(keys[4], (C, C)), init(keys[5], (1, C)),                    # k proj
        init(keys[6], (C, C)), init(keys[7], (1, C)),                    # v proj
        init(keys[8], (C, C)), init(keys[9], (1, C)),                    # out proj
        jnp.ones((1, C), jnp.float32), jnp.zeros((1, C), jnp.float32),   # ln1
        init(keys[10], (C, 2 * C)), init(keys[11], (1, 2 * C)),          # expand
        init(keys[12], (2 * C, C)), init(keys[13], (1, C)),              # squeeze
        jnp.ones((1, C), jnp.float32), jnp.zeros((1, C), jnp.float32),   # ln2
    )

    # Path A: module-faithful (returns attention probabilities).
    out, attn = transformer_layer(x, mem, params, H, return_attention=True)
    out = jax.block_until_ready(out)
    attn = jax.block_until_ready(attn)

    # Path B: flash path, M tiled across 2 grid steps (exercises online softmax).
    out_flash = transformer_layer(x, mem, params, H, return_attention=False, kv_tile=8)
    out_flash = jax.block_until_ready(out_flash)

    ref_out, ref_attn = reference_forward(x, mem, params, H)

    assert out.shape == (B, N, C) and attn.shape == (B, H, N, M)
    assert out_flash.shape == (B, N, C)
    assert jnp.allclose(out, ref_out, atol=2e-2, rtol=2e-2), \
        float(jnp.max(jnp.abs(out - ref_out)))
    assert jnp.allclose(attn, ref_attn, atol=1e-2, rtol=1e-2), \
        float(jnp.max(jnp.abs(attn - ref_attn)))
    assert jnp.allclose(out_flash, ref_out, atol=2e-2, rtol=2e-2), \
        float(jnp.max(jnp.abs(out_flash - ref_out)))

    print("KERNEL_OK")
</pallas_src>

<mosaic_0001>
module attributes {stable_mosaic.version = 11 : i64} {
  func.func @_transformer_attn_kernel(%arg0: i32, %arg1: i32, %arg2: memref<1x8x32xf32, #tpu.memory_space<vmem>>, %arg3: memref<1x16x32xf32, #tpu.memory_space<vmem>>, %arg4: memref<32x32xf32, #tpu.memory_space<vmem>>, %arg5: memref<1x32xf32, #tpu.memory_space<vmem>>, %arg6: memref<32x64xf32, #tpu.memory_space<vmem>>, %arg7: memref<1x64xf32, #tpu.memory_space<vmem>>, %arg8: memref<32x32xf32, #tpu.memory_space<vmem>>, %arg9: memref<1x32xf32, #tpu.memory_space<vmem>>, %arg10: memref<1x32xf32, #tpu.memory_space<vmem>>, %arg11: memref<1x32xf32, #tpu.memory_space<vmem>>, %arg12: memref<32x64xf32, #tpu.memory_space<vmem>>, %arg13: memref<1x64xf32, #tpu.memory_space<vmem>>, %arg14: memref<64x32xf32, #tpu.memory_space<vmem>>, %arg15: memref<1x32xf32, #tpu.memory_space<vmem>>, %arg16: memref<1x32xf32, #tpu.memory_space<vmem>>, %arg17: memref<1x32xf32, #tpu.memory_space<vmem>>, %arg18: memref<1x8x32xf32, #tpu.memory_space<vmem>>, %arg19: memref<1x4x8x16xf32, #tpu.memory_space<vmem>>) attributes {dimension_semantics = [#tpu.dimension_semantics<parallel>, #tpu.dimension_semantics<parallel>], iteration_bounds = array<i64: 2, 1>, scalar_prefetch = 0 : i64, scratch_operands = 0 : i64, tpu.core_type = #tpu.core_type<tc>, window_params = [{transform_indices = @transform_0, window_bounds = array<i64: 1, 8, 32>}, {transform_indices = @transform_1, window_bounds = array<i64: 1, 16, 32>}, {pipeline_mode = #tpu.pipeline_mode<synchronous>, transform_indices = @transform_2, window_bounds = array<i64: 32, 32>}, {pipeline_mode = #tpu.pipeline_mode<synchronous>, transform_indices = @transform_3, window_bounds = array<i64: 1, 32>}, {pipeline_mode = #tpu.pipeline_mode<synchronous>, transform_indices = @transform_4, window_bounds = array<i64: 32, 64>}, {pipeline_mode = #tpu.pipeline_mode<synchronous>, transform_indices = @transform_5, window_bounds = array<i64: 1, 64>}, {pipeline_mode = #tpu.pipeline_mode<synchronous>, transform_indices = @transform_6, window_bounds = array<i64: 32, 32>}, {pipeline_mode = #tpu.pipeline_mode<synchronous>, transform_indices = @transform_7, window_bounds = array<i64: 1, 32>}, {pipeline_mode = #tpu.pipeline_mode<synchronous>, transform_indices = @transform_8, window_bounds = array<i64: 1, 32>}, {pipeline_mode = #tpu.pipeline_mode<synchronous>, transform_indices = @transform_9, window_bounds = array<i64: 1, 32>}, {pipeline_mode = #tpu.pipeline_mode<synchronous>, transform_indices = @transform_10, window_bounds = array<i64: 32, 64>}, {pipeline_mode = #tpu.pipeline_mode<synchronous>, transform_indices = @transform_11, window_bounds = array<i64: 1, 64>}, {pipeline_mode = #tpu.pipeline_mode<synchronous>, transform_indices = @transform_12, window_bounds = array<i64: 64, 32>}, {pipeline_mode = #tpu.pipeline_mode<synchronous>, transform_indices = @transform_13, window_bounds = array<i64: 1, 32>}, {pipeline_mode = #tpu.pipeline_mode<synchronous>, transform_indices = @transform_14, window_bounds = array<i64: 1, 32>}, {pipeline_mode = #tpu.pipeline_mode<synchronous>, transform_indices = @transform_15, window_bounds = array<i64: 1, 32>}, {transform_indices = @transform_16, window_bounds = array<i64: 1, 8, 32>}, {transform_indices = @transform_17, window_bounds = array<i64: 1, 4, 8, 16>}]} {
    %c0 = arith.constant 0 : index
    %c0_0 = arith.constant 0 : index
    %c0_1 = arith.constant 0 : index
    %0 = vector.load %arg2[%c0, %c0_0, %c0_1] : memref<1x8x32xf32, #tpu.memory_space<vmem>>, vector<1x8x32xf32>
    %1 = vector.shape_cast %0 : vector<1x8x32xf32> to vector<8x32xf32>
    %c0_2 = arith.constant 0 : index
    %c0_3 = arith.constant 0 : index
    %c0_4 = arith.constant 0 : index
    %2 = vector.load %arg3[%c0_2, %c0_3, %c0_4] : memref<1x16x32xf32, #tpu.memory_space<vmem>>, vector<1x16x32xf32>
    %3 = vector.shape_cast %2 : vector<1x16x32xf32> to vector<16x32xf32>
    %c0_5 = arith.constant 0 : index
    %c0_6 = arith.constant 0 : index
    %4 = vector.load %arg4[%c0_5, %c0_6] : memref<32x32xf32, #tpu.memory_space<vmem>>, vector<32x32xf32>
    %cst = arith.constant dense<0.000000e+00> : vector<8x32xf32>
    %5 = tpu.matmul %1, %4, %cst {dimension_numbers = #tpu.dot_dimension_numbers<[1], [0], [0], [1], [0, 0, 1, 1], [], []>} : vector<8x32xf32>, vector<32x32xf32>, vector<8x32xf32> -> vector<8x32xf32>
    %c0_7 = arith.constant 0 : index
    %c0_8 = arith.constant 0 : index
    %6 = vector.load %arg5[%c0_7, %c0_8] : memref<1x32xf32, #tpu.memory_space<vmem>>, vector<1x32xf32>
    %7 = vector.broadcast %6 : vector<1x32xf32> to vector<8x32xf32>
    %8 = arith.addf %5, %7 : vector<8x32xf32>
    %c0_9 = arith.constant 0 : index
    %c0_10 = arith.constant 0 : index
    %9 = vector.load %arg6[%c0_9, %c0_10] : memref<32x64xf32, #tpu.memory_space<vmem>>, vector<32x64xf32>
    %cst_11 = arith.constant dense<0.000000e+00> : vector<16x64xf32>
    %10 = tpu.matmul %3, %9, %cst_11 {dimension_numbers = #tpu.dot_dimension_numbers<[1], [0], [0], [1], [0, 0, 1, 1], [], []>} : vector<16x32xf32>, vector<32x64xf32>, vector<16x64xf32> -> vector<16x64xf32>
    %c0_12 = arith.constant 0 : index
    %c0_13 = arith.constant 0 : index
    %11 = vector.load %arg7[%c0_12, %c0_13] : memref<1x64xf32, #tpu.memory_space<vmem>>, vector<1x64xf32>
    %12 = vector.broadcast %11 : vector<1x64xf32> to vector<16x64xf32>
    %13 = arith.addf %10, %12 : vector<16x64xf32>
    %cst_14 = arith.constant 0.353553385 : f32
    %14 = vector.broadcast %cst_14 : f32 to vector<8x32xf32>
    %15 = arith.mulf %8, %14 : vector<8x32xf32>
    %16 = vector.extract_strided_slice %13 {offsets = [0, 0], sizes = [16, 32], strides = [1, 1]} : vector<16x64xf32> to vector<16x32xf32>
    %17 = vector.extract_strided_slice %13 {offsets = [0, 32], sizes = [16, 32], strides = [1, 1]} : vector<16x64xf32> to vector<16x32xf32>
    %18 = vector.extract_strided_slice %15 {offsets = [0, 0], sizes = [8, 8], strides = [1, 1]} : vector<8x32xf32> to vector<8x8xf32>
    %19 = vector.extract_strided_slice %15 {offsets = [0, 8], sizes = [8, 8], strides = [1, 1]} : vector<8x32xf32> to vector<8x8xf32>
    %20 = vector.extract_strided_slice %15 {offsets = [0, 16], sizes = [8, 8], strides = [1, 1]} : vector<8x32xf32> to vector<8x8xf32>
    %21 = vector.extract_strided_slice %15 {offsets = [0, 24], sizes = [8, 8], strides = [1, 1]} : vector<8x32xf32> to vector<8x8xf32>
    %22 = vector.shape_cast %18 : vector<8x8xf32> to vector<1x8x8xf32>
    %23 = vector.shape_cast %19 : vector<8x8xf32> to vector<1x8x8xf32>
    %24 = vector.shape_cast %20 : vector<8x8xf32> to vector<1x8x8xf32>
    %25 = vector.shape_cast %21 : vector<8x8xf32> to vector<1x8x8xf32>
    %26 = tpu.concatenate %22, %23, %24, %25 in 0 : vector<1x8x8xf32>, vector<1x8x8xf32>, vector<1x8x8xf32>, vector<1x8x8xf32> -> vector<4x8x8xf32>
    %27 = vector.extract_strided_slice %16 {offsets = [0, 0], sizes = [16, 8], strides = [1, 1]} : vector<16x32xf32> to vector<16x8xf32>
    %28 = vector.extract_strided_slice %16 {offsets = [0, 8], sizes = [16, 8], strides = [1, 1]} : vector<16x32xf32> to vector<16x8xf32>
    %29 = vector.extract_strided_slice %16 {offsets = [0, 16], sizes = [16, 8], strides = [1, 1]} : vector<16x32xf32> to vector<16x8xf32>
    %30 = vector.extract_strided_slice %16 {offsets = [0, 24], sizes = [16, 8], strides = [1, 1]} : vector<16x32xf32> to vector<16x8xf32>
    %31 = vector.shape_cast %27 : vector<16x8xf32> to vector<1x16x8xf32>
    %32 = vector.shape_cast %28 : vector<16x8xf32> to vector<1x16x8xf32>
    %33 = vector.shape_cast %29 : vector<16x8xf32> to vector<1x16x8xf32>
    %34 = vector.shape_cast %30 : vector<16x8xf32> to vector<1x16x8xf32>
    %35 = tpu.concatenate %31, %32, %33, %34 in 0 : vector<1x16x8xf32>, vector<1x16x8xf32>, vector<1x16x8xf32>, vector<1x16x8xf32> -> vector<4x16x8xf32>
    %36 = vector.extract_strided_slice %17 {offsets = [0, 0], sizes = [16, 8], strides = [1, 1]} : vector<16x32xf32> to vector<16x8xf32>
    %37 = vector.extract_strided_slice %17 {offsets = [0, 8], sizes = [16, 8], strides = [1, 1]} : vector<16x32xf32> to vector<16x8xf32>
    %38 = vector.extract_strided_slice %17 {offsets = [0, 16], sizes = [16, 8], strides = [1, 1]} : vector<16x32xf32> to vector<16x8xf32>
    %39 = vector.extract_strided_slice %17 {offsets = [0, 24], sizes = [16, 8], strides = [1, 1]} : vector<16x32xf32> to vector<16x8xf32>
    %40 = vector.shape_cast %36 : vector<16x8xf32> to vector<1x16x8xf32>
    %41 = vector.shape_cast %37 : vector<16x8xf32> to vector<1x16x8xf32>
    %42 = vector.shape_cast %38 : vector<16x8xf32> to vector<1x16x8xf32>
    %43 = vector.shape_cast %39 : vector<16x8xf32> to vector<1x16x8xf32>
    %44 = tpu.concatenate %40, %41, %42, %43 in 0 : vector<1x16x8xf32>, vector<1x16x8xf32>, vector<1x16x8xf32>, vector<1x16x8xf32> -> vector<4x16x8xf32>
    "tpu.trace_start"() <{level = 10 : i32, message = "hnd,hmd->hnm"}> : () -> ()
    %cst_15 = arith.constant dense<0.000000e+00> : vector<4x8x16xf32>
    %45 = tpu.matmul %26, %35, %cst_15 {dimension_numbers = #tpu.dot_dimension_numbers<[2], [2], [1], [1], [0, 0, 0, 1, 1, 1], [0], [0]>} : vector<4x8x8xf32>, vector<4x16x8xf32>, vector<4x8x16xf32> -> vector<4x8x16xf32>
    "tpu.trace_stop"() : () -> ()
    %cst_16 = arith.constant dense<0xFF800000> : vector<4x8xf32>
    %46 = vector.multi_reduction <maximumf>, %45, %cst_16 [2] : vector<4x8x16xf32> to vector<4x8xf32>
    %47 = vector.shape_cast %46 : vector<4x8xf32> to vector<4x8x1xf32>
    %48 = vector.broadcast %47 : vector<4x8x1xf32> to vector<4x8x16xf32>
    %49 = arith.subf %45, %48 : vector<4x8x16xf32>
    %50 = math.exp %49 : vector<4x8x16xf32>
    %cst_17 = arith.constant dense<0.000000e+00> : vector<4x8xf32>
    %51 = vector.multi_reduction <add>, %50, %cst_17 [2] : vector<4x8x16xf32> to vector<4x8xf32>
    %52 = vector.shape_cast %51 : vector<4x8xf32> to vector<4x8x1xf32>
    %53 = vector.broadcast %52 : vector<4x8x1xf32> to vector<4x8x16xf32>
    %54 = arith.divf %50, %53 : vector<4x8x16xf32>
    %c0_18 = arith.constant 0 : index
    %c0_19 = arith.constant 0 : index
    %c0_20 = arith.constant 0 : index
    %c0_21 = arith.constant 0 : index
    %55 = vector.load %arg19[%c0_18, %c0_19, %c0_20, %c0_21] : memref<1x4x8x16xf32, #tpu.memory_space<vmem>>, vector<1x4x8x16xf32>
    %56 = vector.shape_cast %55 : vector<1x4x8x16xf32> to vector<4x8x16xf32>
    %57 = vector.shape_cast %54 : vector<4x8x16xf32> to vector<1x4x8x16xf32>
    tpu.vector_store %arg19[%c0_18, %c0_19, %c0_20, %c0_21], %57 {strides = array<i32>} : memref<1x4x8x16xf32, #tpu.memory_space<vmem>>, vector<1x4x8x16xf32>,
    "tpu.trace_start"() <{level = 10 : i32, message = "hnm,hmd->hnd"}> : () -> ()
    %cst_22 = arith.constant dense<0.000000e+00> : vector<4x8x8xf32>
    %58 = tpu.matmul %54, %44, %cst_22 {dimension_numbers = #tpu.dot_dimension_numbers<[2], [1], [1], [2], [0, 0, 0, 1, 1, 2], [0], [0]>} : vector<4x8x16xf32>, vector<4x16x8xf32>, vector<4x8x8xf32> -> vector<4x8x8xf32>
    "tpu.trace_stop"() : () -> ()
    %59 = vector.extract_strided_slice %58 {offsets = [0, 0, 0], sizes = [1, 8, 8], strides = [1, 1, 1]} : vector<4x8x8xf32> to vector<1x8x8xf32>
    %60 = vector.shape_cast %59 : vector<1x8x8xf32> to vector<8x8xf32>
    %61 = vector.extract_strided_slice %58 {offsets = [1, 0, 0], sizes = [1, 8, 8], strides = [1, 1, 1]} : vector<4x8x8xf32> to vector<1x8x8xf32>
    %62 = vector.shape_cast %61 : vector<1x8x8xf32> to vector<8x8xf32>
    %63 = vector.extract_strided_slice %58 {offsets = [2, 0, 0], sizes = [1, 8, 8], strides = [1, 1, 1]} : vector<4x8x8xf32> to vector<1x8x8xf32>
    %64 = vector.shape_cast %63 : vector<1x8x8xf32> to vector<8x8xf32>
    %65 = vector.extract_strided_slice %58 {offsets = [3, 0, 0], sizes = [1, 8, 8], strides = [1, 1, 1]} : vector<4x8x8xf32> to vector<1x8x8xf32>
    %66 = vector.shape_cast %65 : vector<1x8x8xf32> to vector<8x8xf32>
    %67 = tpu.concatenate %60, %62, %64, %66 in 1 : vector<8x8xf32>, vector<8x8xf32>, vector<8x8xf32>, vector<8x8xf32> -> vector<8x32xf32>
    %c0_23 = arith.constant 0 : index
    %c0_24 = arith.constant 0 : index
    %68 = vector.load %arg8[%c0_23, %c0_24] : memref<32x32xf32, #tpu.memory_space<vmem>>, vector<32x32xf32>
    %cst_25 = arith.constant dense<0.000000e+00> : vector<8x32xf32>
    %69 = tpu.matmul %67, %68, %cst_25 {dimension_numbers = #tpu.dot_dimension_numbers<[1], [0], [0], [1], [0, 0, 1, 1], [], []>} : vector<8x32xf32>, vector<32x32xf32>, vector<8x32xf32> -> vector<8x32xf32>
    %c0_26 = arith.constant 0 : index
    %c0_27 = arith.constant 0 : index
    %70 = vector.load %arg9[%c0_26, %c0_27] : memref<1x32xf32, #tpu.memory_space<vmem>>, vector<1x32xf32>
    %71 = vector.broadcast %70 : vector<1x32xf32> to vector<8x32xf32>
    %72 = arith.addf %69, %71 : vector<8x32xf32>
    %73 = arith.addf %72, %1 : vector<8x32xf32>
    %c0_28 = arith.constant 0 : index
    %c0_29 = arith.constant 0 : index
    %74 = vector.load %arg10[%c0_28, %c0_29] : memref<1x32xf32, #tpu.memory_space<vmem>>, vector<1x32xf32>
    %c0_30 = arith.constant 0 : index
    %c0_31 = arith.constant 0 : index
    %75 = vector.load %arg11[%c0_30, %c0_31] : memref<1x32xf32, #tpu.memory_space<vmem>>, vector<1x32xf32>
    %cst_32 = arith.constant dense<0.000000e+00> : vector<8xf32>
    %76 = vector.multi_reduction <add>, %73, %cst_32 [1] : vector<8x32xf32> to vector<8xf32>
    %77 = vector.shape_cast %76 : vector<8xf32> to vector<8x1xf32>
    %cst_33 = arith.constant 3.200000e+01 : f32
    %78 = vector.broadcast %cst_33 : f32 to vector<8x1xf32>
    %79 = arith.divf %77, %78 : vector<8x1xf32>
    %80 = vector.broadcast %79 : vector<8x1xf32> to vector<8x32xf32>
    %81 = arith.subf %73, %80 : vector<8x32xf32>
    %82 = arith.mulf %81, %81 : vector<8x32xf32>
    %cst_34 = arith.constant dense<0.000000e+00> : vector<8xf32>
    %83 = vector.multi_reduction <add>, %82, %cst_34 [1] : vector<8x32xf32> to vector<8xf32>
    %84 = vector.shape_cast %83 : vector<8xf32> to vector<8x1xf32>
    %cst_35 = arith.constant 3.200000e+01 : f32
    %85 = vector.broadcast %cst_35 : f32 to vector<8x1xf32>
    %86 = arith.divf %84, %85 : vector<8x1xf32>
    %87 = vector.broadcast %79 : vector<8x1xf32> to vector<8x32xf32>
    %88 = arith.subf %73, %87 : vector<8x32xf32>
    %cst_36 = arith.constant 9.99999974E-6 : f32
    %89 = vector.broadcast %cst_36 : f32 to vector<8x1xf32>
    %90 = arith.addf %86, %89 : vector<8x1xf32>
    %91 = math.rsqrt %90 : vector<8x1xf32>
    %92 = vector.broadcast %91 : vector<8x1xf32> to vector<8x32xf32>
    %93 = arith.mulf %88, %92 : vector<8x32xf32>
    %94 = vector.broadcast %74 : vector<1x32xf32> to vector<8x32xf32>
    %95 = arith.mulf %93, %94 : vector<8x32xf32>
    %96 = vector.broadcast %75 : vector<1x32xf32> to vector<8x32xf32>
    %97 = arith.addf %95, %96 : vector<8x32xf32>
    %c0_37 = arith.constant 0 : index
    %c0_38 = arith.constant 0 : index
    %98 = vector.load %arg12[%c0_37, %c0_38] : memref<32x64xf32, #tpu.memory_space<vmem>>, vector<32x64xf32>
    %cst_39 = arith.constant dense<0.000000e+00> : vector<8x64xf32>
    %99 = tpu.matmul %97, %98, %cst_39 {dimension_numbers = #tpu.dot_dimension_numbers<[1], [0], [0], [1], [0, 0, 1, 1], [], []>} : vector<8x32xf32>, vector<32x64xf32>, vector<8x64xf32> -> vector<8x64xf32>
    %c0_40 = arith.constant 0 : index
    %c0_41 = arith.constant 0 : index
    %100 = vector.load %arg13[%c0_40, %c0_41] : memref<1x64xf32, #tpu.memory_space<vmem>>, vector<1x64xf32>
    %101 = vector.broadcast %100 : vector<1x64xf32> to vector<8x64xf32>
    %102 = arith.addf %99, %101 : vector<8x64xf32>
    %cst_42 = arith.constant 0.000000e+00 : f32
    %103 = vector.broadcast %cst_42 : f32 to vector<8x64xf32>
    %104 = arith.maximumf %102, %103 : vector<8x64xf32>
    %c0_43 = arith.constant 0 : index
    %c0_44 = arith.constant 0 : index
    %105 = vector.load %arg14[%c0_43, %c0_44] : memref<64x32xf32, #tpu.memory_space<vmem>>, vector<64x32xf32>
    %cst_45 = arith.constant dense<0.000000e+00> : vector<8x32xf32>
    %106 = tpu.matmul %104, %105, %cst_45 {dimension_numbers = #tpu.dot_dimension_numbers<[1], [0], [0], [1], [0, 0, 1, 1], [], []>} : vector<8x64xf32>, vector<64x32xf32>, vector<8x32xf32> -> vector<8x32xf32>
    %c0_46 = arith.constant 0 : index
    %c0_47 = arith.constant 0 : index
    %107 = vector.load %arg15[%c0_46, %c0_47] : memref<1x32xf32, #tpu.memory_space<vmem>>, vector<1x32xf32>
    %108 = vector.broadcast %107 : vector<1x32xf32> to vector<8x32xf32>
    %109 = arith.addf %106, %108 : vector<8x32xf32>
    %110 = arith.addf %97, %109 : vector<8x32xf32>
    %c0_48 = arith.constant 0 : index
    %c0_49 = arith.constant 0 : index
    %111 = vector.load %arg16[%c0_48, %c0_49] : memref<1x32xf32, #tpu.memory_space<vmem>>, vector<1x32xf32>
    %c0_50 = arith.constant 0 : index
    %c0_51 = arith.constant 0 : index
    %112 = vector.load %arg17[%c0_50, %c0_51] : memref<1x32xf32, #tpu.memory_space<vmem>>, vector<1x32xf32>
    %cst_52 = arith.constant dense<0.000000e+00> : vector<8xf32>
    %113 = vector.multi_reduction <add>, %110, %cst_52 [1] : vector<8x32xf32> to vector<8xf32>
    %114 = vector.shape_cast %113 : vector<8xf32> to vector<8x1xf32>
    %cst_53 = arith.constant 3.200000e+01 : f32
    %115 = vector.broadcast %cst_53 : f32 to vector<8x1xf32>
    %116 = arith.divf %114, %115 : vector<8x1xf32>
    %117 = vector.broadcast %116 : vector<8x1xf32> to vector<8x32xf32>
    %118 = arith.subf %110, %117 : vector<8x32xf32>
    %119 = arith.mulf %118, %118 : vector<8x32xf32>
    %cst_54 = arith.constant dense<0.000000e+00> : vector<8xf32>
    %120 = vector.multi_reduction <add>, %119, %cst_54 [1] : vector<8x32xf32> to vector<8xf32>
    %121 = vector.shape_cast %120 : vector<8xf32> to vector<8x1xf32>
    %cst_55 = arith.constant 3.200000e+01 : f32
    %122 = vector.broadcast %cst_55 : f32 to vector<8x1xf32>
    %123 = arith.divf %121, %122 : vector<8x1xf32>
    %124 = vector.broadcast %116 : vector<8x1xf32> to vector<8x32xf32>
    %125 = arith.subf %110, %124 : vector<8x32xf32>
    %cst_56 = arith.constant 9.99999974E-6 : f32
    %126 = vector.broadcast %cst_56 : f32 to vector<8x1xf32>
    %127 = arith.addf %123, %126 : vector<8x1xf32>
    %128 = math.rsqrt %127 : vector<8x1xf32>
    %129 = vector.broadcast %128 : vector<8x1xf32> to vector<8x32xf32>
    %130 = arith.mulf %125, %129 : vector<8x32xf32>
    %131 = vector.broadcast %111 : vector<1x32xf32> to vector<8x32xf32>
    %132 = arith.mulf %130, %131 : vector<8x32xf32>
    %133 = vector.broadcast %112 : vector<1x32xf32> to vector<8x32xf32>
    %134 = arith.addf %132, %133 : vector<8x32xf32>
    %c0_57 = arith.constant 0 : index
    %c0_58 = arith.constant 0 : index
    %c0_59 = arith.constant 0 : index
    %135 = vector.load %arg18[%c0_57, %c0_58, %c0_59] : memref<1x8x32xf32, #tpu.memory_space<vmem>>, vector<1x8x32xf32>
    %136 = vector.shape_cast %135 : vector<1x8x32xf32> to vector<8x32xf32>
    %137 = vector.shape_cast %134 : vector<8x32xf32> to vector<1x8x32xf32>
    tpu.vector_store %arg18[%c0_57, %c0_58, %c0_59], %137 {strides = array<i32>} : memref<1x8x32xf32, #tpu.memory_space<vmem>>, vector<1x8x32xf32>,
    return
  }
  func.func @transform_0(%arg0: i32, %arg1: i32) -> (i32, i32, i32) {
    %c0_i32 = arith.constant 0 : i32
    %c0_i32_0 = arith.constant 0 : i32
    return %arg0, %arg1, %c0_i32 : i32, i32, i32
  }
  func.func @transform_1(%arg0: i32, %arg1: i32) -> (i32, i32, i32) {
    %c0_i32 = arith.constant 0 : i32
    %c0_i32_0 = arith.constant 0 : i32
    %c0_i32_1 = arith.constant 0 : i32
    return %arg0, %c0_i32, %c0_i32_0 : i32, i32, i32
  }
  func.func @transform_2(%arg0: i32, %arg1: i32) -> (i32, i32) {
    %c0_i32 = arith.constant 0 : i32
    %c0_i32_0 = arith.constant 0 : i32
    %c0_i32_1 = arith.constant 0 : i32
    return %c0_i32, %c0_i32_0 : i32, i32
  }
  func.func @transform_3(%arg0: i32, %arg1: i32) -> (i32, i32) {
    %c0_i32 = arith.constant 0 : i32
    %c0_i32_0 = arith.constant 0 : i32
    %c0_i32_1 = arith.constant 0 : i32
    return %c0_i32, %c0_i32_0 : i32, i32
  }
  func.func @transform_4(%arg0: i32, %arg1: i32) -> (i32, i32) {
    %c0_i32 = arith.constant 0 : i32
    %c0_i32_0 = arith.constant 0 : i32
    %c0_i32_1 = arith.constant 0 : i32
    return %c0_i32, %c0_i32_0 : i32, i32
  }
  func.func @transform_5(%arg0: i32, %arg1: i32) -> (i32, i32) {
    %c0_i32 = arith.constant 0 : i32
    %c0_i32_0 = arith.constant 0 : i32
    %c0_i32_1 = arith.constant 0 : i32
    return %c0_i32, %c0_i32_0 : i32, i32
  }
  func.func @transform_6(%arg0: i32, %arg1: i32) -> (i32, i32) {
    %c0_i32 = arith.constant 0 : i32
    %c0_i32_0 = arith.constant 0 : i32
    %c0_i32_1 = arith.constant 0 : i32
    return %c0_i32, %c0_i32_0 : i32, i32
  }
  func.func @transform_7(%arg0: i32, %arg1: i32) -> (i32, i32) {
    %c0_i32 = arith.constant 0 : i32
    %c0_i32_0 = arith.constant 0 : i32
    %c0_i32_1 = arith.constant 0 : i32
    return %c0_i32, %c0_i32_0 : i32, i32
  }
  func.func @transform_8(%arg0: i32, %arg1: i32) -> (i32, i32) {
    %c0_i32 = arith.constant 0 : i32
    %c0_i32_0 = arith.constant 0 : i32
    %c0_i32_1 = arith.constant 0 : i32
    return %c0_i32, %c0_i32_0 : i32, i32
  }
  func.func @transform_9(%arg0: i32, %arg1: i32) -> (i32, i32) {
    %c0_i32 = arith.constant 0 : i32
    %c0_i32_0 = arith.constant 0 : i32
    %c0_i32_1 = arith.constant 0 : i32
    return %c0_i32, %c0_i32_0 : i32, i32
  }
  func.func @transform_10(%arg0: i32, %arg1: i32) -> (i32, i32) {
    %c0_i32 = arith.constant 0 : i32
    %c0_i32_0 = arith.constant 0 : i32
    %c0_i32_1 = arith.constant 0 : i32
    return %c0_i32, %c0_i32_0 : i32, i32
  }
  func.func @transform_11(%arg0: i32, %arg1: i32) -> (i32, i32) {
    %c0_i32 = arith.constant 0 : i32
    %c0_i32_0 = arith.constant 0 : i32
    %c0_i32_1 = arith.constant 0 : i32
    return %c0_i32, %c0_i32_0 : i32, i32
  }
  func.func @transform_12(%arg0: i32, %arg1: i32) -> (i32, i32) {
    %c0_i32 = arith.constant 0 : i32
    %c0_i32_0 = arith.constant 0 : i32
    %c0_i32_1 = arith.constant 0 : i32
    return %c0_i32, %c0_i32_0 : i32, i32
  }
  func.func @transform_13(%arg0: i32, %arg1: i32) -> (i32, i32) {
    %c0_i32 = arith.constant 0 : i32
    %c0_i32_0 = arith.constant 0 : i32
    %c0_i32_1 = arith.constant 0 : i32
    return %c0_i32, %c0_i32_0 : i32, i32
  }
  func.func @transform_14(%arg0: i32, %arg1: i32) -> (i32, i32) {
    %c0_i32 = arith.constant 0 : i32
    %c0_i32_0 = arith.constant 0 : i32
    %c0_i32_1 = arith.constant 0 : i32
    return %c0_i32, %c0_i32_0 : i32, i32
  }
  func.func @transform_15(%arg0: i32, %arg1: i32) -> (i32, i32) {
    %c0_i32 = arith.constant 0 : i32
    %c0_i32_0 = arith.constant 0 : i32
    %c0_i32_1 = arith.constant 0 : i32
    return %c0_i32, %c0_i32_0 : i32, i32
  }
  func.func @transform_16(%arg0: i32, %arg1: i32) -> (i32, i32, i32) {
    %c0_i32 = arith.constant 0 : i32
    %c0_i32_0 = arith.constant 0 : i32
    return %arg0, %arg1, %c0_i32 : i32, i32, i32
  }
  func.func @transform_17(%arg0: i32, %arg1: i32) -> (i32, i32, i32, i32) {
    %c0_i32 = arith.constant 0 : i32
    %c0_i32_0 = arith.constant 0 : i32
    %c0_i32_1 = arith.constant 0 : i32
    return %arg0, %c0_i32, %arg1, %c0_i32_0 : i32, i32, i32, i32
  }
}

</mosaic_0001>

<llo_original>
// kernel: tpu_custom_call.1
$region0: #{tpu_custom_call.1}
  #allocation0 [shape = 'u32[]', space=smem, size = 0x4, offset = 0x4, fixed_abs, tag = 'smem constant byte address 0x4 - core index']
  #allocation1 [shape = 'u32[144,128]{1,0:T(1,128)}', space=vmem, size = 0x12000, scoped, tag = 'internal scratch']
  %s0 = inlined_call_operand.hbm [shape: f32[2,8,32], index: 0, kind: input, shape index: {}]
  %s1 = inlined_call_operand.vmem [shape: f32[2,16,32], index: 1, kind: input, shape index: {}]
  %s2 = inlined_call_operand.vmem [shape: f32[32,32], index: 2, kind: input, shape index: {}]
  %s3 = inlined_call_operand.vmem [shape: f32[1,32], index: 3, kind: input, shape index: {}]
  %s4 = inlined_call_operand.vmem [shape: f32[32,64], index: 4, kind: input, shape index: {}]
  %s5 = inlined_call_operand.vmem [shape: f32[1,64], index: 5, kind: input, shape index: {}]
  %s6 = inlined_call_operand.hbm [shape: f32[32,32], index: 6, kind: input, shape index: {}]
  %s7 = inlined_call_operand.vmem [shape: f32[1,32], index: 7, kind: input, shape index: {}]
  %s8 = inlined_call_operand.vmem [shape: f32[1,32], index: 8, kind: input, shape index: {}]
  %s9 = inlined_call_operand.vmem [shape: f32[1,32], index: 9, kind: input, shape index: {}]
  %s10 = inlined_call_operand.hbm [shape: f32[32,64], index: 10, kind: input, shape index: {}]
  %s11 = inlined_call_operand.vmem [shape: f32[1,64], index: 11, kind: input, shape index: {}]
  %s12 = inlined_call_operand.vmem [shape: f32[64,32], index: 12, kind: input, shape index: {}]
  %s13 = inlined_call_operand.vmem [shape: f32[1,32], index: 13, kind: input, shape index: {}]
  %s14 = inlined_call_operand.vmem [shape: f32[1,32], index: 14, kind: input, shape index: {}]
  %s15 = inlined_call_operand.vmem [shape: f32[1,32], index: 15, kind: input, shape index: {}]
  %s16 = inlined_call_operand.hbm [shape: f32[2,8,32], index: 16, kind: output, shape index: {0}]
  %s17 = inlined_call_operand.hbm [shape: f32[2,4,8,16], index: 17, kind: output, shape index: {1}]
  %18 = xla_tuple %s16, %s17
  %s19 = sld [smem:[#allocation0]]
  $region117: #{tpu_custom_call.1} parent=0
    _
  %s21 = ssub.s32 1, %s19
  %s22 = scalar_select 0, %s21, %s19
  $region1: #{tpu_custom_call.1} parent=0
    #allocation2 [shape = 'u8[8192]{0}', space=vmem, size = 0x2000, scoped, tag = 'input window, operand 0']
    #allocation3 [shape = 's32[2]{0}', space=sflag, size = 0x8, scoped, tag = 'scoped memory for tpu_custom_call.1']
    #allocation4 [shape = 's32[2]{0}', space=sflag, size = 0x8, scoped, tag = 'scoped memory for tpu_custom_call.1']
    #allocation5 [shape = 'u8[16384]{0}', space=vmem, size = 0x4000, scoped, tag = 'input window, operand 6, single buffered']
    #allocation6 [shape = 's32[1]{0}', space=sflag, size = 0x4, scoped, tag = 'scoped memory for tpu_custom_call.1']
    #allocation7 [shape = 'u8[16384]{0}', space=vmem, size = 0x4000, scoped, tag = 'input window, operand 10, single buffered']
    #allocation8 [shape = 'u8[8192]{0}', space=vmem, size = 0x2000, scoped, tag = 'output window, operand 0']
    #allocation9 [shape = 'u8[32768]{0}', space=vmem, size = 0x8000, scoped, tag = 'output window, operand 1']
    #allocation10 [shape = 's32[2]{0}', space=sflag, size = 0x8, scoped, tag = 'scoped memory for tpu_custom_call.1']
    %23 = vsyncpa [#allocation3], 0
    %s24 = scalar_lea.sflag [#allocation3], 1
    %25 = vsyncpa %s24, 0
    %26 = vsyncpa [#allocation6], 0
    %27 = vsyncpa [#allocation4], 0
    %s28 = scalar_lea.sflag [#allocation4], 1
    %29 = vsyncpa %s28, 0
    %30 = vsyncpa [#allocation10], 0
    %s31 = scalar_lea.sflag [#allocation10], 1
    %32 = vsyncpa %s31, 0
    loop: start=0, step=1, limit=4
    $region2: #{tpu_custom_call.1} parent=1 // loop_pre_header
      _
    $region3: #{tpu_custom_call.1} parent=1 // loop_header
      %s34 = sphi 0, %s38
      %p35 = scmp.ge.s32.totalorder %s34, 4
      %s41 = sphi 0, %s53
      %s42 = sphi 0, %s49
      %s43 = sphi 0, %s41
      %s44 = sphi 0, %s42
      %s45 = sphi 0, %s43
      %s46 = sphi 0, %s44
      %s58 = sphi 0, %s60
      %s61 = sphi 0, %s58
      %s62 = sphi 0, %s61
      %s78 = sphi 0, %s62
      %s84 = sphi 0, %s86
      %s87 = sphi 0, %s84
      %s88 = sphi 0, %s87
      %s104 = sphi 0, %s88
      %s108 = sphi 0, %s108
      %s110 = sphi 0, %s108
      %s111 = sphi 0, %s110
      %s125 = sphi 0, %s111
      %s129 = sphi 0, %s129
      %s131 = sphi 0, %s129
      %s132 = sphi 0, %s131
      %s146 = sphi 0, %s132
      %s150 = sphi 0, %s150
      %s152 = sphi 0, %s150
      %s153 = sphi 0, %s152
      %s167 = sphi 0, %s153
      %s171 = sphi 0, %s171
      %s173 = sphi 0, %s171
      %s174 = sphi 0, %s173
      %s188 = sphi 0, %s174
      %s192 = sphi 0, %s192
      %s194 = sphi 0, %s192
      %s195 = sphi 0, %s194
      %s209 = sphi 0, %s195
      %s213 = sphi 0, %s213
      %s215 = sphi 0, %s213
      %s216 = sphi 0, %s215
      %s230 = sphi 0, %s216
      %s234 = sphi 0, %s234
      %s236 = sphi 0, %s234
      %s237 = sphi 0, %s236
      %s251 = sphi 0, %s237
      %s255 = sphi 0, %s255
      %s257 = sphi 0, %s255
      %s258 = sphi 0, %s257
      %s272 = sphi 0, %s258
      %s276 = sphi 0, %s276
      %s278 = sphi 0, %s276
      %s279 = sphi 0, %s278
      %s293 = sphi 0, %s279
      %s297 = sphi 0, %s297
      %s299 = sphi 0, %s297
      %s300 = sphi 0, %s299
      %s314 = sphi 0, %s300
      %s318 = sphi 0, %s318
      %s320 = sphi 0, %s318
      %s321 = sphi 0, %s320
      %s335 = sphi 0, %s321
      %s339 = sphi 0, %s339
      %s341 = sphi 0, %s339
      %s342 = sphi 0, %s341
      %s356 = sphi 0, %s342
      %s360 = sphi 0, %s360
      %s362 = sphi 0, %s360
      %s363 = sphi 0, %s362
      %s377 = sphi 0, %s363
      %s381 = sphi 0, %s381
      %s383 = sphi 0, %s381
      %s384 = sphi 0, %s383
      %s398 = sphi 0, %s384
      %s406 = sphi 0, %s408
      %s409 = sphi 0, %s406
      %s410 = sphi 0, %s409
      %s426 = sphi 0, %s410
      %s434 = sphi 0, %s436
      %s437 = sphi 0, %s434
      %s438 = sphi 0, %s437
      %s454 = sphi 0, %s438
    $region4: #{tpu_custom_call.1} parent=1 // loop_header_branch
      %37 = sbr.rel (%p35) target = $region8
    $region5: #{tpu_custom_call.1} parent=1 // loop_body
      %s39 = ssub.s32 %s34, 1
      %s40 = ssub.s32 %s34, 2
      %s47 = sadd.s32 1, %s42
      %p48 = scmp.ge.s32.totalorder %s47, 1
      %s49 = scalar_select %p48, 0, %s47
      %s50 = sadd.s32 1, %s41
      %s51 = scalar_select %p48, %s50, %s41
      %p52 = scmp.ge.s32.totalorder %s51, 2
      %s53 = scalar_select %p52, 0, %s51
      %s54 = ssub.s32 %s41, %s53
      %s55 = ssub.s32 %s42, %s49
      %s56 = sor.u32 %s54, %s55
      %p57 = scmp.eq.s32.totalorder %s56, 0
      %s59 = sadd.s32 %s58, 1
      %s60 = scalar_select %p57, %s58, %s59
      %p63 = pneg %p57
      %p64 = scmp.eq.s32.totalorder %s34, 1
      %p65 = por %p63, %p64
      %p66 = scmp.ne.s32.totalorder %s58, %s61
      %p67 = scmp.eq.s32.totalorder %s34, 0
      %p68 = por %p66, %p67
      %p69 = scmp.ne.s32.totalorder %s58, %s61
      %p70 = scmp.eq.s32.totalorder %s39, 1
      %p71 = por %p69, %p70
      %p72 = scmp.ne.s32.totalorder %s61, %s62
      %p73 = scmp.eq.s32.totalorder %s39, 0
      %p74 = por %p72, %p73
      %p75 = scmp.ne.s32.totalorder %s61, %s62
      %p76 = scmp.eq.s32.totalorder %s40, 1
      %p77 = por %p75, %p76
      %p79 = scmp.ne.s32.totalorder %s62, %s78
      %p80 = scmp.eq.s32.totalorder %s40, 0
      %p81 = por %p79, %p80
      %s82 = ssub.s32 %s41, %s53
      %p83 = scmp.eq.s32.totalorder %s82, 0
      %s85 = sadd.s32 %s84, 1
      %s86 = scalar_select %p83, %s84, %s85
      %p89 = pneg %p83
      %p90 = scmp.eq.s32.totalorder %s34, 1
      %p91 = por %p89, %p90
      %p92 = scmp.ne.s32.totalorder %s84, %s87
      %p93 = scmp.eq.s32.totalorder %s34, 0
      %p94 = por %p92, %p93
      %p95 = scmp.ne.s32.totalorder %s84, %s87
      %p96 = scmp.eq.s32.totalorder %s39, 1
      %p97 = por %p95, %p96
      %p98 = scmp.ne.s32.totalorder %s87, %s88
      %p99 = scmp.eq.s32.totalorder %s39, 0
      %p100 = por %p98, %p99
      %p101 = scmp.ne.s32.totalorder %s87, %s88
      %p102 = scmp.eq.s32.totalorder %s40, 1
      %p103 = por %p101, %p102
      %p105 = scmp.ne.s32.totalorder %s88, %s104
      %p106 = scmp.eq.s32.totalorder %s40, 0
      %p107 = por %p105, %p106
      %s109 = sadd.s32 %s108, 1
      %p112 = scmp.eq.s32.totalorder %s34, 1
      %p113 = scmp.ne.s32.totalorder %s108, %s110
      %p114 = scmp.eq.s32.totalorder %s34, 0
      %p115 = por %p113, %p114
      %p116 = scmp.ne.s32.totalorder %s108, %s110
      %p117 = scmp.eq.s32.totalorder %s39, 1
      %p118 = por %p116, %p117
      %p119 = scmp.ne.s32.totalorder %s110, %s111
      %p120 = scmp.eq.s32.totalorder %s39, 0
      %p121 = por %p119, %p120
      %p122 = scmp.ne.s32.totalorder %s110, %s111
      %p123 = scmp.eq.s32.totalorder %s40, 1
      %p124 = por %p122, %p123
      %p126 = scmp.ne.s32.totalorder %s111, %s125
      %p127 = scmp.eq.s32.totalorder %s40, 0
      %p128 = por %p126, %p127
      %s130 = sadd.s32 %s129, 1
      %p133 = scmp.eq.s32.totalorder %s34, 1
      %p134 = scmp.ne.s32.totalorder %s129, %s131
      %p135 = scmp.eq.s32.totalorder %s34, 0
      %p136 = por %p134, %p135
      %p137 = scmp.ne.s32.totalorder %s129, %s131
      %p138 = scmp.eq.s32.totalorder %s39, 1
      %p139 = por %p137, %p138
      %p140 = scmp.ne.s32.totalorder %s131, %s132
      %p141 = scmp.eq.s32.totalorder %s39, 0
      %p142 = por %p140, %p141
      %p143 = scmp.ne.s32.totalorder %s131, %s132
      %p144 = scmp.eq.s32.totalorder %s40, 1
      %p145 = por %p143, %p144
      %p147 = scmp.ne.s32.totalorder %s132, %s146
      %p148 = scmp.eq.s32.totalorder %s40, 0
      %p149 = por %p147, %p148
      %s151 = sadd.s32 %s150, 1
      %p154 = scmp.eq.s32.totalorder %s34, 1
      %p155 = scmp.ne.s32.totalorder %s150, %s152
      %p156 = scmp.eq.s32.totalorder %s34, 0
      %p157 = por %p155, %p156
      %p158 = scmp.ne.s32.totalorder %s150, %s152
      %p159 = scmp.eq.s32.totalorder %s39, 1
      %p160 = por %p158, %p159
      %p161 = scmp.ne.s32.totalorder %s152, %s153
      %p162 = scmp.eq.s32.totalorder %s39, 0
      %p163 = por %p161, %p162
      %p164 = scmp.ne.s32.totalorder %s152, %s153
      %p165 = scmp.eq.s32.totalorder %s40, 1
      %p166 = por %p164, %p165
      %p168 = scmp.ne.s32.totalorder %s153, %s167
      %p169 = scmp.eq.s32.totalorder %s40, 0
      %p170 = por %p168, %p169
      %s172 = sadd.s32 %s171, 1
      %p175 = scmp.eq.s32.totalorder %s34, 1
      %p176 = scmp.ne.s32.totalorder %s171, %s173
      %p177 = scmp.eq.s32.totalorder %s34, 0
      %p178 = por %p176, %p177
      %p179 = scmp.ne.s32.totalorder %s171, %s173
      %p180 = scmp.eq.s32.totalorder %s39, 1
      %p181 = por %p179, %p180
      %p182 = scmp.ne.s32.totalorder %s173, %s174
      %p183 = scmp.eq.s32.totalorder %s39, 0
      %p184 = por %p182, %p183
      %p185 = scmp.ne.s32.totalorder %s173, %s174
      %p186 = scmp.eq.s32.totalorder %s40, 1
      %p187 = por %p185, %p186
      %p189 = scmp.ne.s32.totalorder %s174, %s188
      %p190 = scmp.eq.s32.totalorder %s40, 0
      %p191 = por %p189, %p190
      %s193 = sadd.s32 %s192, 1
      %p196 = scmp.eq.s32.totalorder %s34, 1
      %p197 = scmp.ne.s32.totalorder %s192, %s194
      %p198 = scmp.eq.s32.totalorder %s34, 0
      %p199 = por %p197, %p198
      %p200 = scmp.ne.s32.totalorder %s192, %s194
      %p201 = scmp.eq.s32.totalorder %s39, 1
      %p202 = por %p200, %p201
      %p203 = scmp.ne.s32.totalorder %s194, %s195
      %p204 = scmp.eq.s32.totalorder %s39, 0
      %p205 = por %p203, %p204
      %p206 = scmp.ne.s32.totalorder %s194, %s195
      %p207 = scmp.eq.s32.totalorder %s40, 1
      %p208 = por %p206, %p207
      %p210 = scmp.ne.s32.totalorder %s195, %s209
      %p211 = scmp.eq.s32.totalorder %s40, 0
      %p212 = por %p210, %p211
      %s214 = sadd.s32 %s213, 1
      %p217 = scmp.eq.s32.totalorder %s34, 1
      %p218 = scmp.ne.s32.totalorder %s213, %s215
      %p219 = scmp.eq.s32.totalorder %s34, 0
      %p220 = por %p218, %p219
      %p221 = scmp.ne.s32.totalorder %s213, %s215
      %p222 = scmp.eq.s32.totalorder %s39, 1
      %p223 = por %p221, %p222
      %p224 = scmp.ne.s32.totalorder %s215, %s216
      %p225 = scmp.eq.s32.totalorder %s39, 0
      %p226 = por %p224, %p225
      %p227 = scmp.ne.s32.totalorder %s215, %s216
      %p228 = scmp.eq.s32.totalorder %s40, 1
      %p229 = por %p227, %p228
      %p231 = scmp.ne.s32.totalorder %s216, %s230
      %p232 = scmp.eq.s32.totalorder %s40, 0
      %p233 = por %p231, %p232
      %s235 = sadd.s32 %s234, 1
      %p238 = scmp.eq.s32.totalorder %s34, 1
      %p239 = scmp.ne.s32.totalorder %s234, %s236
      %p240 = scmp.eq.s32.totalorder %s34, 0
      %p241 = por %p239, %p240
      %p242 = scmp.ne.s32.totalorder %s234, %s236
      %p243 = scmp.eq.s32.totalorder %s39, 1
      %p244 = por %p242, %p243
      %p245 = scmp.ne.s32.totalorder %s236, %s237
      %p246 = scmp.eq.s32.totalorder %s39, 0
      %p247 = por %p245, %p246
      %p248 = scmp.ne.s32.totalorder %s236, %s237
      %p249 = scmp.eq.s32.totalorder %s40, 1
      %p250 = por %p248, %p249
      %p252 = scmp.ne.s32.totalorder %s237, %s251
      %p253 = scmp.eq.s32.totalorder %s40, 0
      %p254 = por %p252, %p253
      %s256 = sadd.s32 %s255, 1
      %p259 = scmp.eq.s32.totalorder %s34, 1
      %p260 = scmp.ne.s32.totalorder %s255, %s257
      %p261 = scmp.eq.s32.totalorder %s34, 0
      %p262 = por %p260, %p261
      %p263 = scmp.ne.s32.totalorder %s255, %s257
      %p264 = scmp.eq.s32.totalorder %s39, 1
      %p265 = por %p263, %p264
      %p266 = scmp.ne.s32.totalorder %s257, %s258
      %p267 = scmp.eq.s32.totalorder %s39, 0
      %p268 = por %p266, %p267
      %p269 = scmp.ne.s32.totalorder %s257, %s258
      %p270 = scmp.eq.s32.totalorder %s40, 1
      %p271 = por %p269, %p270
      %p273 = scmp.ne.s32.totalorder %s258, %s272
      %p274 = scmp.eq.s32.totalorder %s40, 0
      %p275 = por %p273, %p274
      %s277 = sadd.s32 %s276, 1
      %p280 = scmp.eq.s32.totalorder %s34, 1
      %p281 = scmp.ne.s32.totalorder %s276, %s278
      %p282 = scmp.eq.s32.totalorder %s34, 0
      %p283 = por %p281, %p282
      %p284 = scmp.ne.s32.totalorder %s276, %s278
      %p285 = scmp.eq.s32.totalorder %s39, 1
      %p286 = por %p284, %p285
      %p287 = scmp.ne.s32.totalorder %s278, %s279
      %p288 = scmp.eq.s32.totalorder %s39, 0
      %p289 = por %p287, %p288
      %p290 = scmp.ne.s32.totalorder %s278, %s279
      %p291 = scmp.eq.s32.totalorder %s40, 1
      %p292 = por %p290, %p291
      %p294 = scmp.ne.s32.totalorder %s279, %s293
      %p295 = scmp.eq.s32.totalorder %s40, 0
      %p296 = por %p294, %p295
      %s298 = sadd.s32 %s297, 1
      %p301 = scmp.eq.s32.totalorder %s34, 1
      %p302 = scmp.ne.s32.totalorder %s297, %s299
      %p303 = scmp.eq.s32.totalorder %s34, 0
      %p304 = por %p302, %p303
      %p305 = scmp.ne.s32.totalorder %s297, %s299
      %p306 = scmp.eq.s32.totalorder %s39, 1
      %p307 = por %p305, %p306
      %p308 = scmp.ne.s32.totalorder %s299, %s300
      %p309 = scmp.eq.s32.totalorder %s39, 0
      %p310 = por %p308, %p309
      %p311 = scmp.ne.s32.totalorder %s299, %s300
      %p312 = scmp.eq.s32.totalorder %s40, 1
      %p313 = por %p311, %p312
      %p315 = scmp.ne.s32.totalorder %s300, %s314
      %p316 = scmp.eq.s32.totalorder %s40, 0
      %p317 = por %p315, %p316
      %s319 = sadd.s32 %s318, 1
      %p322 = scmp.eq.s32.totalorder %s34, 1
      %p323 = scmp.ne.s32.totalorder %s318, %s320
      %p324 = scmp.eq.s32.totalorder %s34, 0
      %p325 = por %p323, %p324
      %p326 = scmp.ne.s32.totalorder %s318, %s320
      %p327 = scmp.eq.s32.totalorder %s39, 1
      %p328 = por %p326, %p327
      %p329 = scmp.ne.s32.totalorder %s320, %s321
      %p330 = scmp.eq.s32.totalorder %s39, 0
      %p331 = por %p329, %p330
      %p332 = scmp.ne.s32.totalorder %s320, %s321
      %p333 = scmp.eq.s32.totalorder %s40, 1
      %p334 = por %p332, %p333
      %p336 = scmp.ne.s32.totalorder %s321, %s335
      %p337 = scmp.eq.s32.totalorder %s40, 0
      %p338 = por %p336, %p337
      %s340 = sadd.s32 %s339, 1
      %p343 = scmp.eq.s32.totalorder %s34, 1
      %p344 = scmp.ne.s32.totalorder %s339, %s341
      %p345 = scmp.eq.s32.totalorder %s34, 0
      %p346 = por %p344, %p345
      %p347 = scmp.ne.s32.totalorder %s339, %s341
      %p348 = scmp.eq.s32.totalorder %s39, 1
      %p349 = por %p347, %p348
      %p350 = scmp.ne.s32.totalorder %s341, %s342
      %p351 = scmp.eq.s32.totalorder %s39, 0
      %p352 = por %p350, %p351
      %p353 = scmp.ne.s32.totalorder %s341, %s342
      %p354 = scmp.eq.s32.totalorder %s40, 1
      %p355 = por %p353, %p354
      %p357 = scmp.ne.s32.totalorder %s342, %s356
      %p358 = scmp.eq.s32.totalorder %s40, 0
      %p359 = por %p357, %p358
      %s361 = sadd.s32 %s360, 1
      %p364 = scmp.eq.s32.totalorder %s34, 1
      %p365 = scmp.ne.s32.totalorder %s360, %s362
      %p366 = scmp.eq.s32.totalorder %s34, 0
      %p367 = por %p365, %p366
      %p368 = scmp.ne.s32.totalorder %s360, %s362
      %p369 = scmp.eq.s32.totalorder %s39, 1
      %p370 = por %p368, %p369
      %p371 = scmp.ne.s32.totalorder %s362, %s363
      %p372 = scmp.eq.s32.totalorder %s39, 0
      %p373 = por %p371, %p372
      %p374 = scmp.ne.s32.totalorder %s362, %s363
      %p375 = scmp.eq.s32.totalorder %s40, 1
      %p376 = por %p374, %p375
      %p378 = scmp.ne.s32.totalorder %s363, %s377
      %p379 = scmp.eq.s32.totalorder %s40, 0
      %p380 = por %p378, %p379
      %s382 = sadd.s32 %s381, 1
      %p385 = scmp.eq.s32.totalorder %s34, 1
      %p386 = scmp.ne.s32.totalorder %s381, %s383
      %p387 = scmp.eq.s32.totalorder %s34, 0
      %p388 = por %p386, %p387
      %p389 = scmp.ne.s32.totalorder %s381, %s383
      %p390 = scmp.eq.s32.totalorder %s39, 1
      %p391 = por %p389, %p390
      %p392 = scmp.ne.s32.totalorder %s383, %s384
      %p393 = scmp.eq.s32.totalorder %s39, 0
      %p394 = por %p392, %p393
      %p395 = scmp.ne.s32.totalorder %s383, %s384
      %p396 = scmp.eq.s32.totalorder %s40, 1
      %p397 = por %p395, %p396
      %p399 = scmp.ne.s32.totalorder %s384, %s398
      %p400 = scmp.eq.s32.totalorder %s40, 0
      %p401 = por %p399, %p400
      %s402 = ssub.s32 %s41, %s53
      %s403 = ssub.s32 %s42, %s49
      %s404 = sor.u32 %s402, %s403
      %p405 = scmp.eq.s32.totalorder %s404, 0
      %s407 = sadd.s32 %s406, 1
      %s408 = scalar_select %p405, %s406, %s407
      %p411 = pneg %p405
      %p412 = scmp.eq.s32.totalorder %s34, 1
      %p413 = por %p411, %p412
      %p414 = scmp.ne.s32.totalorder %s406, %s409
      %p415 = scmp.eq.s32.totalorder %s34, 0
      %p416 = por %p414, %p415
      %p417 = scmp.ne.s32.totalorder %s406, %s409
      %p418 = scmp.eq.s32.totalorder %s39, 1
      %p419 = por %p417, %p418
      %p420 = scmp.ne.s32.totalorder %s409, %s410
      %p421 = scmp.eq.s32.totalorder %s39, 0
      %p422 = por %p420, %p421
      %p423 = scmp.ne.s32.totalorder %s409, %s410
      %p424 = scmp.eq.s32.totalorder %s40, 1
      %p425 = por %p423, %p424
      %p427 = scmp.ne.s32.totalorder %s410, %s426
      %p428 = scmp.eq.s32.totalorder %s40, 0
      %p429 = por %p427, %p428
      %s430 = ssub.s32 %s41, %s53
      %s431 = ssub.s32 %s42, %s49
      %s432 = sor.u32 %s430, %s431
      %p433 = scmp.eq.s32.totalorder %s432, 0
      %s435 = sadd.s32 %s434, 1
      %s436 = scalar_select %p433, %s434, %s435
      %p439 = pneg %p433
      %p440 = scmp.eq.s32.totalorder %s34, 1
      %p441 = por %p439, %p440
      %p442 = scmp.ne.s32.totalorder %s434, %s437
      %p443 = scmp.eq.s32.totalorder %s34, 0
      %p444 = por %p442, %p443
      %p445 = scmp.ne.s32.totalorder %s434, %s437
      %p446 = scmp.eq.s32.totalorder %s39, 1
      %p447 = por %p445, %p446
      %p448 = scmp.ne.s32.totalorder %s437, %s438
      %p449 = scmp.eq.s32.totalorder %s39, 0
      %p450 = por %p448, %p449
      %p451 = scmp.ne.s32.totalorder %s437, %s438
      %p452 = scmp.eq.s32.totalorder %s40, 1
      %p453 = por %p451, %p452
      %p455 = scmp.ne.s32.totalorder %s438, %s454
      %p456 = scmp.eq.s32.totalorder %s40, 0
      %p457 = por %p455, %p456
      %p458 = scmp.le.s32.totalorder 1, %s34
      %p459 = scmp.lt.s32.totalorder %s34, 3
      %p460 = pnand %p458, %p459
      %p461 = pneg %p460
      // Predicated region
      $region9: #{tpu_custom_call.1} parent=5 // pred_check
        _
      $region10: #{tpu_custom_call.1} parent=5 // pred_check_branch
        %463 = sbr.rel (%p460) target = $region12
      $region11: #{tpu_custom_call.1} parent=5 // pred_region
        %s464 = ssub.s32 %s34, 1
        // Predicated region
        $region13: #{tpu_custom_call.1} parent=11 // pred_check
          %p465 = pneg %p121
        $region14: #{tpu_custom_call.1} parent=11 // pred_check_branch
          %467 = sbr.rel (%p465) target = $region16
        $region15: #{tpu_custom_call.1} parent=11 // pred_region
          _
        $region16: #{tpu_custom_call.1} parent=11 // pred_fallthru
          _
        // Predicated region
        $region17: #{tpu_custom_call.1} parent=11 // pred_check
          %p468 = pneg %p142
        $region18: #{tpu_custom_call.1} parent=11 // pred_check_branch
          %470 = sbr.rel (%p468) target = $region20
        $region19: #{tpu_custom_call.1} parent=11 // pred_region
          _
        $region20: #{tpu_custom_call.1} parent=11 // pred_fallthru
          _
        // Predicated region
        $region21: #{tpu_custom_call.1} parent=11 // pred_check
          %p471 = pneg %p163
        $region22: #{tpu_custom_call.1} parent=11 // pred_check_branch
          %473 = sbr.rel (%p471) target = $region24
        $region23: #{tpu_custom_call.1} parent=11 // pred_region
          _
        $region24: #{tpu_custom_call.1} parent=11 // pred_fallthru
          _
        // Predicated region
        $region25: #{tpu_custom_call.1} parent=11 // pred_check
          %p474 = pneg %p184
        $region26: #{tpu_custom_call.1} parent=11 // pred_check_branch
          %476 = sbr.rel (%p474) target = $region28
        $region27: #{tpu_custom_call.1} parent=11 // pred_region
          _
        $region28: #{tpu_custom_call.1} parent=11 // pred_fallthru
          _
        // Predicated region
        $region29: #{tpu_custom_call.1} parent=11 // pred_check
          %p477 = pneg %p205
        $region30: #{tpu_custom_call.1} parent=11 // pred_check_branch
          %479 = sbr.rel (%p477) target = $region32
        $region31: #{tpu_custom_call.1} parent=11 // pred_region
          %s481 = ssub.s32 512, 512
          %482 = vsyncadd [#allocation6], %s481
          %s483 = sshll.u32 [#allocation5], 4
          %s484 = int_to_ptr.vmem [resolvable:$true] %s483
          %489 = dma.hbm_to_vmem [thread:$0]  %s6, 512, %s484, [#allocation6], 128, 128, 8
        $region32: #{tpu_custom_call.1} parent=11 // pred_fallthru
          _
        // Predicated region
        $region33: #{tpu_custom_call.1} parent=11 // pred_check
          %p490 = pneg %p226
        $region34: #{tpu_custom_call.1} parent=11 // pred_check_branch
          %492 = sbr.rel (%p490) target = $region36
        $region35: #{tpu_custom_call.1} parent=11 // pred_region
          _
        $region36: #{tpu_custom_call.1} parent=11 // pred_fallthru
          _
        // Predicated region
        $region37: #{tpu_custom_call.1} parent=11 // pred_check
          %p493 = pneg %p247
        $region38: #{tpu_custom_call.1} parent=11 // pred_check_branch
          %495 = sbr.rel (%p493) target = $region40
        $region39: #{tpu_custom_call.1} parent=11 // pred_region
          _
        $region40: #{tpu_custom_call.1} parent=11 // pred_fallthru
          _
        // Predicated region
        $region41: #{tpu_custom_call.1} parent=11 // pred_check
          %p496 = pneg %p268
        $region42: #{tpu_custom_call.1} parent=11 // pred_check_branch
          %498 = sbr.rel (%p496) target = $region44
        $region43: #{tpu_custom_call.1} parent=11 // pred_region
          _
        $region44: #{tpu_custom_call.1} parent=11 // pred_fallthru
          _
        // Predicated region
        $region45: #{tpu_custom_call.1} parent=11 // pred_check
          %p499 = pneg %p289
        $region46: #{tpu_custom_call.1} parent=11 // pred_check_branch
          %501 = sbr.rel (%p499) target = $region48
        $region47: #{tpu_custom_call.1} parent=11 // pred_region
          %s503 = ssub.s32 512, 512
          %504 = vsyncadd [#allocation6], %s503
          %s505 = sshll.u32 [#allocation7], 4
          %s506 = int_to_ptr.vmem [resolvable:$true] %s505
          %511 = dma.hbm_to_vmem [thread:$0]  %s10, 512, %s506, [#allocation6], 128, 128, 8
        $region48: #{tpu_custom_call.1} parent=11 // pred_fallthru
          _
        // Predicated region
        $region49: #{tpu_custom_call.1} parent=11 // pred_check
          %p512 = pneg %p310
        $region50: #{tpu_custom_call.1} parent=11 // pred_check_branch
          %514 = sbr.rel (%p512) target = $region52
        $region51: #{tpu_custom_call.1} parent=11 // pred_region
          _
        $region52: #{tpu_custom_call.1} parent=11 // pred_fallthru
          _
        // Predicated region
        $region53: #{tpu_custom_call.1} parent=11 // pred_check
          %p515 = pneg %p331
        $region54: #{tpu_custom_call.1} parent=11 // pred_check_branch
          %517 = sbr.rel (%p515) target = $region56
        $region55: #{tpu_custom_call.1} parent=11 // pred_region
          _
        $region56: #{tpu_custom_call.1} parent=11 // pred_fallthru
          _
        // Predicated region
        $region57: #{tpu_custom_call.1} parent=11 // pred_check
          %p518 = pneg %p352
        $region58: #{tpu_custom_call.1} parent=11 // pred_check_branch
          %520 = sbr.rel (%p518) target = $region60
        $region59: #{tpu_custom_call.1} parent=11 // pred_region
          _
        $region60: #{tpu_custom_call.1} parent=11 // pred_fallthru
          _
        // Predicated region
        $region61: #{tpu_custom_call.1} parent=11 // pred_check
          %p521 = pneg %p373
        $region62: #{tpu_custom_call.1} parent=11 // pred_check_branch
          %523 = sbr.rel (%p521) target = $region64
        $region63: #{tpu_custom_call.1} parent=11 // pred_region
          _
        $region64: #{tpu_custom_call.1} parent=11 // pred_fallthru
          _
        // Predicated region
        $region65: #{tpu_custom_call.1} parent=11 // pred_check
          %p524 = pneg %p394
        $region66: #{tpu_custom_call.1} parent=11 // pred_check_branch
          %526 = sbr.rel (%p524) target = $region68
        $region67: #{tpu_custom_call.1} parent=11 // pred_region
          _
        $region68: #{tpu_custom_call.1} parent=11 // pred_fallthru
          _
      $region12: #{tpu_custom_call.1} parent=5 // pred_fallthru
        _
      %p527 = scmp.lt.s32.totalorder %s34, 2
      // Predicated region
      $region69: #{tpu_custom_call.1} parent=5 // pred_check
        %p528 = pneg %p527
      $region70: #{tpu_custom_call.1} parent=5 // pred_check_branch
        %530 = sbr.rel (%p528) target = $region72
      $region71: #{tpu_custom_call.1} parent=5 // pred_region
        // Predicated region
        $region73: #{tpu_custom_call.1} parent=71 // pred_check
          %p531 = pneg %p68
        $region74: #{tpu_custom_call.1} parent=71 // pred_check_branch
          %533 = sbr.rel (%p531) target = $region76
        $region75: #{tpu_custom_call.1} parent=71 // pred_region
          %s534 = sand.u32 %s58, 1
          %s535 = scalar_lea.sflag [#allocation3], %s534
          %s536 = sand.u32 %s58, 1
          %s537 = smul.addr %s536, 8
          %s538 = scalar_lea.vmem [#allocation2], %s537
          %s540 = ssub.s32 128, 128
          %541 = vsyncadd %s535, %s540
          %s542 = sadd.s32 %s42, %s41
          %s543 = smul.addr %s542, 128
          %s544 = scalar_lea.hbm %s0, %s543
          %s546 = sshll.u32 %s538, 4
          %s547 = int_to_ptr.vmem [resolvable:$true] %s546
          %549 = dma.hbm_to_vmem [thread:$0]  %s544, 128, %s547, %s535
        $region76: #{tpu_custom_call.1} parent=71 // pred_fallthru
          _
        // Predicated region
        $region77: #{tpu_custom_call.1} parent=71 // pred_check
          %p550 = pneg %p94
        $region78: #{tpu_custom_call.1} parent=71 // pred_check_branch
          %552 = sbr.rel (%p550) target = $region80
        $region79: #{tpu_custom_call.1} parent=71 // pred_region
          %p553 = scmp.lt.s32.totalorder %s41, 1
          %s554 = scalar_select %p553, %s41, 1
          %s555 = smul.addr %s554, 2
          %s556 = smul.addr %s555, 8
          %s557 = scalar_lea.vmem %s1, %s556
        $region80: #{tpu_custom_call.1} parent=71 // pred_fallthru
          _
      $region72: #{tpu_custom_call.1} parent=5 // pred_fallthru
        _
      %p558 = scmp.le.s32.totalorder 1, %s34
      %p559 = scmp.lt.s32.totalorder %s34, 3
      %p560 = pnand %p558, %p559
      %p561 = pneg %p560
      // Predicated region
      $region81: #{tpu_custom_call.1} parent=5 // pred_check
        _
      $region82: #{tpu_custom_call.1} parent=5 // pred_check_branch
        %563 = sbr.rel (%p560) target = $region84
      $region83: #{tpu_custom_call.1} parent=5 // pred_region
        %s564 = ssub.s32 %s34, 1
        %s565 = sand.u32 %s61, 1
        %s566 = scalar_lea.sflag [#allocation3], %s565
        %s567 = sand.u32 %s61, 1
        %s568 = smul.addr %s567, 8
        %s569 = scalar_lea.vmem [#allocation2], %s568
        // Predicated region
        $region85: #{tpu_custom_call.1} parent=83 // pred_check
          %p570 = pneg %p74
        $region86: #{tpu_custom_call.1} parent=83 // pred_check_branch
          %572 = sbr.rel (%p570) target = $region88
        $region87: #{tpu_custom_call.1} parent=83 // pred_region
          %573 = dma.done %s566, 128
        $region88: #{tpu_custom_call.1} parent=83 // pred_fallthru
          _
        // Predicated region
        $region89: #{tpu_custom_call.1} parent=83 // pred_check
          %p574 = pneg %p205
        $region90: #{tpu_custom_call.1} parent=83 // pred_check_branch
          %576 = sbr.rel (%p574) target = $region92
        $region91: #{tpu_custom_call.1} parent=83 // pred_region
          %577 = dma.done [#allocation6], 512
        $region92: #{tpu_custom_call.1} parent=83 // pred_fallthru
          _
        // Predicated region
        $region93: #{tpu_custom_call.1} parent=83 // pred_check
          %p578 = pneg %p289
        $region94: #{tpu_custom_call.1} parent=83 // pred_check_branch
          %580 = sbr.rel (%p578) target = $region96
        $region95: #{tpu_custom_call.1} parent=83 // pred_region
          %581 = dma.done [#allocation6], 512
        $region96: #{tpu_custom_call.1} parent=83 // pred_fallthru
          _
        %s582 = sand.u32 %s61, 1
        %s583 = scalar_lea.sflag [#allocation3], %s582
        %s584 = sand.u32 %s61, 1
        %s585 = smul.addr %s584, 8
        %s586 = scalar_lea.vmem [#allocation2], %s585
        %p587 = pneg %p74
        %p588 = pneg %p71
        %p589 = scmp.lt.s32.totalorder %s43, 1
        %s590 = scalar_select %p589, %s43, 1
        %s591 = smul.addr %s590, 2
        %s592 = smul.addr %s591, 8
        %s593 = scalar_lea.vmem %s1, %s592
        %p594 = pneg %p100
        %p595 = pneg %p97
        %p596 = pneg %p121
        %p597 = pneg %p118
        %p598 = pneg %p142
        %p599 = pneg %p139
        %p600 = pneg %p163
        %p601 = pneg %p160
        %p602 = pneg %p184
        %p603 = pneg %p181
        %p604 = pneg %p205
        %p605 = pneg %p202
        %p606 = pneg %p226
        %p607 = pneg %p223
        %p608 = pneg %p247
        %p609 = pneg %p244
        %p610 = pneg %p268
        %p611 = pneg %p265
        %p612 = pneg %p289
        %p613 = pneg %p286
        %p614 = pneg %p310
        %p615 = pneg %p307
        %p616 = pneg %p331
        %p617 = pneg %p328
        %p618 = pneg %p352
        %p619 = pneg %p349
        %p620 = pneg %p373
        %p621 = pneg %p370
        %p622 = pneg %p394
        %p623 = pneg %p391
        %p624 = pneg %p422
        %p625 = pneg %p419
        %s626 = sand.u32 %s409, 1
        %s627 = scalar_lea.sflag [#allocation4], %s626
        %s628 = sand.u32 %s409, 1
        %s629 = smul.addr %s628, 8
        %s630 = scalar_lea.vmem [#allocation8], %s629
        %p631 = pneg %p450
        %p632 = pneg %p447
        %s633 = sand.u32 %s437, 1
        %s634 = scalar_lea.sflag [#allocation10], %s633
        %s635 = sand.u32 %s437, 1
        %s636 = smul.addr %s635, 32
        %s637 = scalar_lea.vmem [#allocation9], %s636
        %p638 = scmp.lt.s32.totalorder %s43, 1
        %s639 = scalar_select %p638, %s43, 1
        %s640 = smul.addr %s639, 2
        %s641 = smul.addr %s640, 8
        %s642 = scalar_lea.vmem %s1, %s641
        %v643 = vld [vmem:[%s569] sm:$0xff]
        %v644 = vld [vmem:[%s642] sm:$0xff]
        %v645 = vld [vmem:[%s642 + $0x8] sm:$0xff]
        %v646 = vld [vmem:[%s2] sm:$0xff]
        %v647 = vld [vmem:[%s2 + $0x8] sm:$0xff]
        %v648 = vld [vmem:[%s2 + $0x10] sm:$0xff]
        %v649 = vld [vmem:[%s2 + $0x18] sm:$0xff]
        %v650 = vld [vmem:[%s3] sm:$0x1]
        %v652 = vlaneseq
        %v653 = vshrl.u32 %v652, 7
        %v654 = vsub.s32 0, %v653
        %v655 = vrot.slane %v650, %v654
        %vm657 = vcmask 261120
        %v659 = vsel %vm657, %v643, 0
        %661 = vmatprep.subr.mxu0 0.0
        %662 = vmatpush1.msra.mxu0 %v646
        %663 = vmatprep.subr.mxu0 0.0
        %664 = vmatpush1.msra.mxu0 %v647
        %665 = vmatprep.subr.mxu0 0.0
        %666 = vmatpush1.msra.mxu0 %v648
        %667 = vmatprep.subr.mxu0 0.0
        %668 = vmatpush1.msra.mxu0 %v649
        %669 = vmatprep.subr.mxu0 0.0
        %670 = vmatpush1.msra.mxu0 0.0
        %671 = vmatprep.subr.mxu0 0.0
        %672 = vmatpush1.msra.mxu0 0.0
        %673 = vmatprep.subr.mxu0 0.0
        %674 = vmatpush1.msra.mxu0 0.0
        %675 = vmatprep.subr.mxu0 0.0
        %676 = vmatpush1.msra.mxu0 0.0
        %677 = vmatprep.subr.mxu0 0.0
        %678 = vmatpush1.msra.mxu0 0.0
        %679 = vmatprep.subr.mxu0 0.0
        %680 = vmatpush1.msra.mxu0 0.0
        %681 = vmatprep.subr.mxu0 0.0
        %682 = vmatpush1.msra.mxu0 0.0
        %683 = vmatprep.subr.mxu0 0.0
        %684 = vmatpush1.msra.mxu0 0.0
        %685 = vmatprep.subr.mxu0 0.0
        %686 = vmatpush1.msra.mxu0 0.0
        %687 = vmatprep.subr.mxu0 0.0
        %688 = vmatpush1.msra.mxu0 0.0
        %689 = vmatprep.subr.mxu0 0.0
        %690 = vmatpush1.msra.mxu0 0.0
        %691 = vmatprep.subr.mxu0 0.0
        %692 = vmatpush1.msra.mxu0 0.0
        %693 = vmatprep.subr.mxu0 0.0
        %694 = vmatpush1.msra.mxu0 0.0
        %695 = vmatprep.subr.mxu0 0.0
        %696 = vmatpush1.msra.mxu0 0.0
        %697 = vmatprep.subr.mxu0 0.0
        %698 = vmatpush1.msra.mxu0 0.0
        %699 = vmatprep.subr.mxu0 0.0
        %700 = vmatpush1.msra.mxu0 0.0
        %701 = vmatprep.subr.mxu0 0.0
        %702 = vmatpush1.msra.mxu0 0.0
        %703 = vmatprep.subr.mxu0 0.0
        %704 = vmatpush1.msra.mxu0 0.0
        %705 = vmatprep.subr.mxu0 0.0
        %706 = vmatpush1.msra.mxu0 0.0
        %707 = vmatprep.subr.mxu0 0.0
        %708 = vmatpush1.msra.mxu0 0.0
        %709 = vmatprep.subr.mxu0 0.0
        %710 = vmatpush1.msra.mxu0 0.0
        %711 = vmatprep.subr.mxu0 0.0
        %712 = vmatpush1.msra.mxu0 0.0
        %713 = vmatprep.subr.mxu0 0.0
        %714 = vmatpush1.msra.mxu0 0.0
        %715 = vmatprep.subr.mxu0 0.0
        %716 = vmatpush1.msra.mxu0 0.0
        %717 = vmatprep.subr.mxu0 0.0
        %718 = vmatpush1.msra.mxu0 0.0
        %719 = vmatprep.subr.mxu0 0.0
        %720 = vmatpush1.msra.mxu0 0.0
        %721 = vmatprep.subr.mxu0 0.0
        %722 = vmatpush1.msra.mxu0 0.0
        %723 = vmatprep.subr.mxu0 0.0
        %724 = vmatpush1.msra.mxu0 0.0
        %725 = vmatprep.mubr.f32.mxu0 0.0
        %726 = vmatmul.mubr.f32.gmra.mrb[0].mxu0 %v659
        %v727 = vpop.f32.mrb[0].mxu0
        %v728 = vadd.f32 %v655, %v727
        %v729 = vpop.f32.mrb[0].mxu0
        %730 = vdwg.mxu0
        %v731 = vld [vmem:[%s4] sm:$0xff]
        %v732 = vld [vmem:[%s4 + $0x8] sm:$0xff]
        %v733 = vld [vmem:[%s4 + $0x10] sm:$0xff]
        %v734 = vld [vmem:[%s4 + $0x18] sm:$0xff]
        %v735 = vld [vmem:[%s5] sm:$0x1]
        %v737 = vlaneseq
        %v738 = vshrl.u32 %v737, 7
        %v739 = vsub.s32 0, %v738
        %v740 = vrot.slane %v735, %v739
        %v743 = vsel %vm657, %v644, 0
        %v746 = vsel %vm657, %v645, 0
        %748 = vmatprep.subr.mxu0 0.0
        %749 = vmatpush1.msra.mxu0 %v731
        %750 = vmatprep.subr.mxu0 0.0
        %751 = vmatpush1.msra.mxu0 %v732
        %752 = vmatprep.subr.mxu0 0.0
        %753 = vmatpush1.msra.mxu0 %v733
        %754 = vmatprep.subr.mxu0 0.0
        %755 = vmatpush1.msra.mxu0 %v734
        %756 = vmatprep.subr.mxu0 0.0
        %757 = vmatpush1.msra.mxu0 0.0
        %758 = vmatprep.subr.mxu0 0.0
        %759 = vmatpush1.msra.mxu0 0.0
        %760 = vmatprep.subr.mxu0 0.0
        %761 = vmatpush1.msra.mxu0 0.0
        %762 = vmatprep.subr.mxu0 0.0
        %763 = vmatpush1.msra.mxu0 0.0
        %764 = vmatprep.subr.mxu0 0.0
        %765 = vmatpush1.msra.mxu0 0.0
        %766 = vmatprep.subr.mxu0 0.0
        %767 = vmatpush1.msra.mxu0 0.0
        %768 = vmatprep.subr.mxu0 0.0
        %769 = vmatpush1.msra.mxu0 0.0
        %770 = vmatprep.subr.mxu0 0.0
        %771 = vmatpush1.msra.mxu0 0.0
        %772 = vmatprep.subr.mxu0 0.0
        %773 = vmatpush1.msra.mxu0 0.0
        %774 = vmatprep.subr.mxu0 0.0
        %775 = vmatpush1.msra.mxu0 0.0
        %776 = vmatprep.subr.mxu0 0.0
        %777 = vmatpush1.msra.mxu0 0.0
        %778 = vmatprep.subr.mxu0 0.0
        %779 = vmatpush1.msra.mxu0 0.0
        %780 = vmatprep.subr.mxu0 0.0
        %781 = vmatpush1.msra.mxu0 0.0
        %782 = vmatprep.subr.mxu0 0.0
        %783 = vmatpush1.msra.mxu0 0.0
        %784 = vmatprep.subr.mxu0 0.0
        %785 = vmatpush1.msra.mxu0 0.0
        %786 = vmatprep.subr.mxu0 0.0
        %787 = vmatpush1.msra.mxu0 0.0
        %788 = vmatprep.subr.mxu0 0.0
        %789 = vmatpush1.msra.mxu0 0.0
        %790 = vmatprep.subr.mxu0 0.0
        %791 = vmatpush1.msra.mxu0 0.0
        %792 = vmatprep.subr.mxu0 0.0
        %793 = vmatpush1.msra.mxu0 0.0
        %794 = vmatprep.subr.mxu0 0.0
        %795 = vmatpush1.msra.mxu0 0.0
        %796 = vmatprep.subr.mxu0 0.0
        %797 = vmatpush1.msra.mxu0 0.0
        %798 = vmatprep.subr.mxu0 0.0
        %799 = vmatpush1.msra.mxu0 0.0
        %800 = vmatprep.subr.mxu0 0.0
        %801 = vmatpush1.msra.mxu0 0.0
        %802 = vmatprep.subr.mxu0 0.0
        %803 = vmatpush1.msra.mxu0 0.0
        %804 = vmatprep.subr.mxu0 0.0
        %805 = vmatpush1.msra.mxu0 0.0
        %806 = vmatprep.subr.mxu0 0.0
        %807 = vmatpush1.msra.mxu0 0.0
        %808 = vmatprep.subr.mxu0 0.0
        %809 = vmatpush1.msra.mxu0 0.0
        %810 = vmatprep.subr.mxu0 0.0
        %811 = vmatpush1.msra.mxu0 0.0
        %812 = vmatprep.mubr.f32.mxu0 0.0
        %813 = vmatmul.mubr.f32.gmra.mrb[0].mxu0 %v743
        %v814 = vpop.f32.mrb[0].mxu0
        %v815 = vadd.f32 %v740, %v814
        %v816 = vpop.f32.mrb[0].mxu0
        %817 = vmatprep.mubr.f32.mxu0 0.0
        %818 = vmatmul.mubr.f32.gmra.mrb[0].mxu0 %v746
        %v819 = vpop.f32.mrb[0].mxu0
        %v820 = vadd.f32 %v740, %v819
        %v821 = vpop.f32.mrb[0].mxu0
        %822 = vdwg.mxu0
        %v823 = vmul.f32 %v728, 0.35355338
        %825 = vrot.lane.b32.xlu0 %v823, 120
        %v826 = vpop.permute.xlu0 %825
        %827 = vrot.lane.b32.xlu0 %v823, 112
        %v828 = vpop.permute.xlu0 %827
        %829 = vrot.lane.b32.xlu0 %v823, 104
        %v830 = vpop.permute.xlu0 %829
        %833 = vrot.lane.b32.xlu0 %v815, 120
        %v834 = vpop.permute.xlu0 %833
        %835 = vrot.lane.b32.xlu0 %v820, 120
        %v836 = vpop.permute.xlu0 %835
        %837 = vrot.lane.b32.xlu0 %v815, 112
        %v838 = vpop.permute.xlu0 %837
        %839 = vrot.lane.b32.xlu0 %v820, 112
        %v840 = vpop.permute.xlu0 %839
        %841 = vrot.lane.b32.xlu0 %v815, 104
        %v842 = vpop.permute.xlu0 %841
        %843 = vrot.lane.b32.xlu0 %v820, 104
        %v844 = vpop.permute.xlu0 %843
        %vm845 = vcmask 64512
        %v846 = vsel %vm845, %v823, 0
        %v848 = vsel %vm845, %v815, 0
        %v850 = vsel %vm845, %v820, 0
        %852 = vmatprep.subr.mxu0 0.0
        %853 = vmatpush1.xpose.msra.mxu0 %v848
        %854 = vmatprep.subr.mxu0 0.0
        %855 = vmatpush1.xpose.msra.mxu0 %v850
        %856 = vmatprep.subr.mxu0 0.0
        %857 = vmatpush1.xpose.msra.mxu0 0.0
        %858 = vmatprep.subr.mxu0 0.0
        %859 = vmatpush1.xpose.msra.mxu0 0.0
        %860 = vmatprep.subr.mxu0 0.0
        %861 = vmatpush1.xpose.msra.mxu0 0.0
        %862 = vmatprep.subr.mxu0 0.0
        %863 = vmatpush1.xpose.msra.mxu0 0.0
        %864 = vmatprep.subr.mxu0 0.0
        %865 = vmatpush1.xpose.msra.mxu0 0.0
        %866 = vmatprep.subr.mxu0 0.0
        %867 = vmatpush1.xpose.msra.mxu0 0.0
        %868 = vmatprep.subr.mxu0 0.0
        %869 = vmatpush1.xpose.msra.mxu0 0.0
        %870 = vmatprep.subr.mxu0 0.0
        %871 = vmatpush1.xpose.msra.mxu0 0.0
        %872 = vmatprep.subr.mxu0 0.0
        %873 = vmatpush1.xpose.msra.mxu0 0.0
        %874 = vmatprep.subr.mxu0 0.0
        %875 = vmatpush1.xpose.msra.mxu0 0.0
        %876 = vmatprep.subr.mxu0 0.0
        %877 = vmatpush1.xpose.msra.mxu0 0.0
        %878 = vmatprep.subr.mxu0 0.0
        %879 = vmatpush1.xpose.msra.mxu0 0.0
        %880 = vmatprep.subr.mxu0 0.0
        %881 = vmatpush1.xpose.msra.mxu0 0.0
        %882 = vmatprep.subr.mxu0 0.0
        %883 = vmatpush1.xpose.msra.mxu0 0.0
        %884 = vmatprep.subr.mxu0 0.0
        %885 = vmatpush1.xpose.msra.mxu0 0.0
        %886 = vmatprep.subr.mxu0 0.0
        %887 = vmatpush1.xpose.msra.mxu0 0.0
        %888 = vmatprep.subr.mxu0 0.0
        %889 = vmatpush1.xpose.msra.mxu0 0.0
        %890 = vmatprep.subr.mxu0 0.0
        %891 = vmatpush1.xpose.msra.mxu0 0.0
        %892 = vmatprep.subr.mxu0 0.0
        %893 = vmatpush1.xpose.msra.mxu0 0.0
        %894 = vmatprep.subr.mxu0 0.0
        %895 = vmatpush1.xpose.msra.mxu0 0.0
        %896 = vmatprep.subr.mxu0 0.0
        %897 = vmatpush1.xpose.msra.mxu0 0.0
        %898 = vmatprep.subr.mxu0 0.0
        %899 = vmatpush1.xpose.msra.mxu0 0.0
        %900 = vmatprep.subr.mxu0 0.0
        %901 = vmatpush1.xpose.msra.mxu0 0.0
        %902 = vmatprep.subr.mxu0 0.0
        %903 = vmatpush1.xpose.msra.mxu0 0.0
        %904 = vmatprep.subr.mxu0 0.0
        %905 = vmatpush1.xpose.msra.mxu0 0.0
        %906 = vmatprep.subr.mxu0 0.0
        %907 = vmatpush1.xpose.msra.mxu0 0.0
        %908 = vmatprep.subr.mxu0 0.0
        %909 = vmatpush1.xpose.msra.mxu0 0.0
        %910 = vmatprep.subr.mxu0 0.0
        %911 = vmatpush1.xpose.msra.mxu0 0.0
        %912 = vmatprep.subr.mxu0 0.0
        %913 = vmatpush1.xpose.msra.mxu0 0.0
        %914 = vmatprep.subr.mxu0 0.0
        %915 = vmatpush1.xpose.msra.mxu0 0.0
        %916 = vmatprep.mubr.f32.mxu0 0.0
        %917 = vmatmul.mubr.f32.gmra.mrb[0].mxu0 %v846
        %v918 = vpop.f32.mrb[0].mxu0
        %v919 = vadd.f32 0.0, %v918
        %v920 = vpop.f32.mrb[0].mxu0
        %921 = vdwg.mxu0
        %v922 = vsel %vm845, %v826, 0
        %v924 = vsel %vm845, %v834, 0
        %v926 = vsel %vm845, %v836, 0
        %928 = vmatprep.subr.mxu0 0.0
        %929 = vmatpush1.xpose.msra.mxu0 %v924
        %930 = vmatprep.subr.mxu0 0.0
        %931 = vmatpush1.xpose.msra.mxu0 %v926
        %932 = vmatprep.subr.mxu0 0.0
        %933 = vmatpush1.xpose.msra.mxu0 0.0
        %934 = vmatprep.subr.mxu0 0.0
        %935 = vmatpush1.xpose.msra.mxu0 0.0
        %936 = vmatprep.subr.mxu0 0.0
        %937 = vmatpush1.xpose.msra.mxu0 0.0
        %938 = vmatprep.subr.mxu0 0.0
        %939 = vmatpush1.xpose.msra.mxu0 0.0
        %940 = vmatprep.subr.mxu0 0.0
        %941 = vmatpush1.xpose.msra.mxu0 0.0
        %942 = vmatprep.subr.mxu0 0.0
        %943 = vmatpush1.xpose.msra.mxu0 0.0
        %944 = vmatprep.subr.mxu0 0.0
        %945 = vmatpush1.xpose.msra.mxu0 0.0
        %946 = vmatprep.subr.mxu0 0.0
        %947 = vmatpush1.xpose.msra.mxu0 0.0
        %948 = vmatprep.subr.mxu0 0.0
        %949 = vmatpush1.xpose.msra.mxu0 0.0
        %950 = vmatprep.subr.mxu0 0.0
        %951 = vmatpush1.xpose.msra.mxu0 0.0
        %952 = vmatprep.subr.mxu0 0.0
        %953 = vmatpush1.xpose.msra.mxu0 0.0
        %954 = vmatprep.subr.mxu0 0.0
        %955 = vmatpush1.xpose.msra.mxu0 0.0
        %956 = vmatprep.subr.mxu0 0.0
        %957 = vmatpush1.xpose.msra.mxu0 0.0
        %958 = vmatprep.subr.mxu0 0.0
        %959 = vmatpush1.xpose.msra.mxu0 0.0
        %960 = vmatprep.subr.mxu0 0.0
        %961 = vmatpush1.xpose.msra.mxu0 0.0
        %962 = vmatprep.subr.mxu0 0.0
        %963 = vmatpush1.xpose.msra.mxu0 0.0
        %964 = vmatprep.subr.mxu0 0.0
        %965 = vmatpush1.xpose.msra.mxu0 0.0
        %966 = vmatprep.subr.mxu0 0.0
        %967 = vmatpush1.xpose.msra.mxu0 0.0
        %968 = vmatprep.subr.mxu0 0.0
        %969 = vmatpush1.xpose.msra.mxu0 0.0
        %970 = vmatprep.subr.mxu0 0.0
        %971 = vmatpush1.xpose.msra.mxu0 0.0
        %972 = vmatprep.subr.mxu0 0.0
        %973 = vmatpush1.xpose.msra.mxu0 0.0
        %974 = vmatprep.subr.mxu0 0.0
        %975 = vmatpush1.xpose.msra.mxu0 0.0
        %976 = vmatprep.subr.mxu0 0.0
        %977 = vmatpush1.xpose.msra.mxu0 0.0
        %978 = vmatprep.subr.mxu0 0.0
        %979 = vmatpush1.xpose.msra.mxu0 0.0
        %980 = vmatprep.subr.mxu0 0.0
        %981 = vmatpush1.xpose.msra.mxu0 0.0
        %982 = vmatprep.subr.mxu0 0.0
        %983 = vmatpush1.xpose.msra.mxu0 0.0
        %984 = vmatprep.subr.mxu0 0.0
        %985 = vmatpush1.xpose.msra.mxu0 0.0
        %986 = vmatprep.subr.mxu0 0.0
        %987 = vmatpush1.xpose.msra.mxu0 0.0
        %988 = vmatprep.subr.mxu0 0.0
        %989 = vmatpush1.xpose.msra.mxu0 0.0
        %990 = vmatprep.subr.mxu0 0.0
        %991 = vmatpush1.xpose.msra.mxu0 0.0
        %992 = vmatprep.mubr.f32.mxu0 0.0
        %993 = vmatmul.mubr.f32.gmra.mrb[0].mxu0 %v922
        %v994 = vpop.f32.mrb[0].mxu0
        %v995 = vadd.f32 0.0, %v994
        %v996 = vpop.f32.mrb[0].mxu0
        %997 = vdwg.mxu0
        %v998 = vsel %vm845, %v828, 0
        %v1000 = vsel %vm845, %v838, 0
        %v1002 = vsel %vm845, %v840, 0
        %1004 = vmatprep.subr.mxu0 0.0
        %1005 = vmatpush1.xpose.msra.mxu0 %v1000
        %1006 = vmatprep.subr.mxu0 0.0
        %1007 = vmatpush1.xpose.msra.mxu0 %v1002
        %1008 = vmatprep.subr.mxu0 0.0
        %1009 = vmatpush1.xpose.msra.mxu0 0.0
        %1010 = vmatprep.subr.mxu0 0.0
        %1011 = vmatpush1.xpose.msra.mxu0 0.0
        %1012 = vmatprep.subr.mxu0 0.0
        %1013 = vmatpush1.xpose.msra.mxu0 0.0
        %1014 = vmatprep.subr.mxu0 0.0
        %1015 = vmatpush1.xpose.msra.mxu0 0.0
        %1016 = vmatprep.subr.mxu0 0.0
        %1017 = vmatpush1.xpose.msra.mxu0 0.0
        %1018 = vmatprep.subr.mxu0 0.0
        %1019 = vmatpush1.xpose.msra.mxu0 0.0
        %1020 = vmatprep.subr.mxu0 0.0
        %1021 = vmatpush1.xpose.msra.mxu0 0.0
        %1022 = vmatprep.subr.mxu0 0.0
        %1023 = vmatpush1.xpose.msra.mxu0 0.0
        %1024 = vmatprep.subr.mxu0 0.0
        %1025 = vmatpush1.xpose.msra.mxu0 0.0
        %1026 = vmatprep.subr.mxu0 0.0
        %1027 = vmatpush1.xpose.msra.mxu0 0.0
        %1028 = vmatprep.subr.mxu0 0.0
        %1029 = vmatpush1.xpose.msra.mxu0 0.0
        %1030 = vmatprep.subr.mxu0 0.0
        %1031 = vmatpush1.xpose.msra.mxu0 0.0
        %1032 = vmatprep.subr.mxu0 0.0
        %1033 = vmatpush1.xpose.msra.mxu0 0.0
        %1034 = vmatprep.subr.mxu0 0.0
        %1035 = vmatpush1.xpose.msra.mxu0 0.0
        %1036 = vmatprep.subr.mxu0 0.0
        %1037 = vmatpush1.xpose.msra.mxu0 0.0
        %1038 = vmatprep.subr.mxu0 0.0
        %1039 = vmatpush1.xpose.msra.mxu0 0.0
        %1040 = vmatprep.subr.mxu0 0.0
        %1041 = vmatpush1.xpose.msra.mxu0 0.0
        %1042 = vmatprep.subr.mxu0 0.0
        %1043 = vmatpush1.xpose.msra.mxu0 0.0
        %1044 = vmatprep.subr.mxu0 0.0
        %1045 = vmatpush1.xpose.msra.mxu0 0.0
        %1046 = vmatprep.subr.mxu0 0.0
        %1047 = vmatpush1.xpose.msra.mxu0 0.0
        %1048 = vmatprep.subr.mxu0 0.0
        %1049 = vmatpush1.xpose.msra.mxu0 0.0
        %1050 = vmatprep.subr.mxu0 0.0
        %1051 = vmatpush1.xpose.msra.mxu0 0.0
        %1052 = vmatprep.subr.mxu0 0.0
        %1053 = vmatpush1.xpose.msra.mxu0 0.0
        %1054 = vmatprep.subr.mxu0 0.0
        %1055 = vmatpush1.xpose.msra.mxu0 0.0
        %1056 = vmatprep.subr.mxu0 0.0
        %1057 = vmatpush1.xpose.msra.mxu0 0.0
        %1058 = vmatprep.subr.mxu0 0.0
        %1059 = vmatpush1.xpose.msra.mxu0 0.0
        %1060 = vmatprep.subr.mxu0 0.0
        %1061 = vmatpush1.xpose.msra.mxu0 0.0
        %1062 = vmatprep.subr.mxu0 0.0
        %1063 = vmatpush1.xpose.msra.mxu0 0.0
        %1064 = vmatprep.subr.mxu0 0.0
        %1065 = vmatpush1.xpose.msra.mxu0 0.0
        %1066 = vmatprep.subr.mxu0 0.0
        %1067 = vmatpush1.xpose.msra.mxu0 0.0
        %1068 = vmatprep.mubr.f32.mxu0 0.0
        %1069 = vmatmul.mubr.f32.gmra.mrb[0].mxu0 %v998
        %v1070 = vpop.f32.mrb[0].mxu0
        %v1071 = vadd.f32 0.0, %v1070
        %v1072 = vpop.f32.mrb[0].mxu0
        %1073 = vdwg.mxu0
        %v1074 = vsel %vm845, %v830, 0
        %v1076 = vsel %vm845, %v842, 0
        %v1078 = vsel %vm845, %v844, 0
        %1080 = vmatprep.subr.mxu0 0.0
        %1081 = vmatpush1.xpose.msra.mxu0 %v1076
        %1082 = vmatprep.subr.mxu0 0.0
        %1083 = vmatpush1.xpose.msra.mxu0 %v1078
        %1084 = vmatprep.subr.mxu0 0.0
        %1085 = vmatpush1.xpose.msra.mxu0 0.0
        %1086 = vmatprep.subr.mxu0 0.0
        %1087 = vmatpush1.xpose.msra.mxu0 0.0
        %1088 = vmatprep.subr.mxu0 0.0
        %1089 = vmatpush1.xpose.msra.mxu0 0.0
        %1090 = vmatprep.subr.mxu0 0.0
        %1091 = vmatpush1.xpose.msra.mxu0 0.0
        %1092 = vmatprep.subr.mxu0 0.0
        %1093 = vmatpush1.xpose.msra.mxu0 0.0
        %1094 = vmatprep.subr.mxu0 0.0
        %1095 = vmatpush1.xpose.msra.mxu0 0.0
        %1096 = vmatprep.subr.mxu0 0.0
        %1097 = vmatpush1.xpose.msra.mxu0 0.0
        %1098 = vmatprep.subr.mxu0 0.0
        %1099 = vmatpush1.xpose.msra.mxu0 0.0
        %1100 = vmatprep.subr.mxu0 0.0
        %1101 = vmatpush1.xpose.msra.mxu0 0.0
        %1102 = vmatprep.subr.mxu0 0.0
        %1103 = vmatpush1.xpose.msra.mxu0 0.0
        %1104 = vmatprep.subr.mxu0 0.0
        %1105 = vmatpush1.xpose.msra.mxu0 0.0
        %1106 = vmatprep.subr.mxu0 0.0
        %1107 = vmatpush1.xpose.msra.mxu0 0.0
        %1108 = vmatprep.subr.mxu0 0.0
        %1109 = vmatpush1.xpose.msra.mxu0 0.0
        %1110 = vmatprep.subr.mxu0 0.0
        %1111 = vmatpush1.xpose.msra.mxu0 0.0
        %1112 = vmatprep.subr.mxu0 0.0
        %1113 = vmatpush1.xpose.msra.mxu0 0.0
        %1114 = vmatprep.subr.mxu0 0.0
        %1115 = vmatpush1.xpose.msra.mxu0 0.0
        %1116 = vmatprep.subr.mxu0 0.0
        %1117 = vmatpush1.xpose.msra.mxu0 0.0
        %1118 = vmatprep.subr.mxu0 0.0
        %1119 = vmatpush1.xpose.msra.mxu0 0.0
        %1120 = vmatprep.subr.mxu0 0.0
        %1121 = vmatpush1.xpose.msra.mxu0 0.0
        %1122 = vmatprep.subr.mxu0 0.0
        %1123 = vmatpush1.xpose.msra.mxu0 0.0
        %1124 = vmatprep.subr.mxu0 0.0
        %1125 = vmatpush1.xpose.msra.mxu0 0.0
        %1126 = vmatprep.subr.mxu0 0.0
        %1127 = vmatpush1.xpose.msra.mxu0 0.0
        %1128 = vmatprep.subr.mxu0 0.0
        %1129 = vmatpush1.xpose.msra.mxu0 0.0
        %1130 = vmatprep.subr.mxu0 0.0
        %1131 = vmatpush1.xpose.msra.mxu0 0.0
        %1132 = vmatprep.subr.mxu0 0.0
        %1133 = vmatpush1.xpose.msra.mxu0 0.0
        %1134 = vmatprep.subr.mxu0 0.0
        %1135 = vmatpush1.xpose.msra.mxu0 0.0
        %1136 = vmatprep.subr.mxu0 0.0
        %1137 = vmatpush1.xpose.msra.mxu0 0.0
        %1138 = vmatprep.subr.mxu0 0.0
        %1139 = vmatpush1.xpose.msra.mxu0 0.0
        %1140 = vmatprep.subr.mxu0 0.0
        %1141 = vmatpush1.xpose.msra.mxu0 0.0
        %1142 = vmatprep.subr.mxu0 0.0
        %1143 = vmatpush1.xpose.msra.mxu0 0.0
        %1144 = vmatprep.mubr.f32.mxu0 0.0
        %1145 = vmatmul.mubr.f32.gmra.mrb[0].mxu0 %v1074
        %v1146 = vpop.f32.mrb[0].mxu0
        %v1147 = vadd.f32 0.0, %v1146
        %v1148 = vpop.f32.mrb[0].mxu0
        %1149 = vdwg.mxu0
        %vm1150 = vcmask 130048
        %v1151 = vsel %vm1150, %v919, -inf
        %1152 = vmax.xlane.f32.xlu0 %v1151
        %v1153 = vpop.xlane.xlu0 %1152
        %v1154 = vsel %vm1150, %v995, -inf
        %1155 = vmax.xlane.f32.xlu0 %v1154
        %v1156 = vpop.xlane.xlu0 %1155
        %v1157 = vsel %vm1150, %v1071, -inf
        %1158 = vmax.xlane.f32.xlu0 %v1157
        %v1159 = vpop.xlane.xlu0 %1158
        %v1160 = vsel %vm1150, %v1147, -inf
        %1161 = vmax.xlane.f32.xlu0 %v1160
        %v1162 = vpop.xlane.xlu0 %1161
        %v1163 = vsub.f32 %v919, %v1153
        %v1164 = vsub.f32 %v995, %v1156
        %v1165 = vsub.f32 %v1071, %v1159
        %v1166 = vsub.f32 %v1147, %v1162
        %v1167 = vmul.f32 %v1163, 1.442695
        %v1168 = vpow.pop %v1167
        %v1169 = vmul.f32 %v1164, 1.442695
        %v1170 = vpow.pop %v1169
        %v1171 = vmul.f32 %v1165, 1.442695
        %v1172 = vpow.pop %v1171
        %v1173 = vmul.f32 %v1166, 1.442695
        %v1174 = vpow.pop %v1173
        %v1175 = vsel %vm1150, %v1168, 0.0
        %1176 = vadd.xlane.f32.xlu0 %v1175
        %v1177 = vpop.xlane.xlu0 %1176
        %v1178 = vsel %vm1150, %v1170, 0.0
        %1179 = vadd.xlane.f32.xlu0 %v1178
        %v1180 = vpop.xlane.xlu0 %1179
        %v1181 = vsel %vm1150, %v1172, 0.0
        %1182 = vadd.xlane.f32.xlu0 %v1181
        %v1183 = vpop.xlane.xlu0 %1182
        %v1184 = vsel %vm1150, %v1174, 0.0
        %1185 = vadd.xlane.f32.xlu0 %v1184
        %v1186 = vpop.xlane.xlu0 %1185
        %v1187 = vrcp.pop %v1177
        %v1188 = vmul.f32 %v1168, %v1187
        %v1189 = vrcp.pop %v1180
        %v1190 = vmul.f32 %v1170, %v1189
        %v1191 = vrcp.pop %v1183
        %v1192 = vmul.f32 %v1172, %v1191
        %v1193 = vrcp.pop %v1186
        %v1194 = vmul.f32 %v1174, %v1193
        %1195 = vst.msk [vmem:[%s637] sm:$0xff] %vm1150, %v1188
        %1196 = vst.msk [vmem:[%s637 + $0x8] sm:$0xff] %vm1150, %v1190
        %1197 = vst.msk [vmem:[%s637 + $0x10] sm:$0xff] %vm1150, %v1192
        %1198 = vst.msk [vmem:[%s637 + $0x18] sm:$0xff] %vm1150, %v1194
        %1199 = vrot.lane.b32.xlu0 %v815, 96
        %v1200 = vpop.permute.xlu0 %1199
        %1201 = vrot.lane.b32.xlu0 %v820, 96
        %v1202 = vpop.permute.xlu0 %1201
        %v1206 = vsel %vm1150, %v1188, 0
        %1208 = vmatprep.subr.mxu0 0.0
        %1209 = vmatpush1.msra.mxu0 %v1200
        %1210 = vmatprep.subr.mxu0 0.0
        %1211 = vmatpush1.msra.mxu0 %v1202
        %1212 = vmatprep.subr.mxu0 0.0
        %1213 = vmatpush1.msra.mxu0 0.0
        %1214 = vmatprep.subr.mxu0 0.0
        %1215 = vmatpush1.msra.mxu0 0.0
        %1216 = vmatprep.subr.mxu0 0.0
        %1217 = vmatpush1.msra.mxu0 0.0
        %1218 = vmatprep.subr.mxu0 0.0
        %1219 = vmatpush1.msra.mxu0 0.0
        %1220 = vmatprep.subr.mxu0 0.0
        %1221 = vmatpush1.msra.mxu0 0.0
        %1222 = vmatprep.subr.mxu0 0.0
        %1223 = vmatpush1.msra.mxu0 0.0
        %1224 = vmatprep.subr.mxu0 0.0
        %1225 = vmatpush1.msra.mxu0 0.0
        %1226 = vmatprep.subr.mxu0 0.0
        %1227 = vmatpush1.msra.mxu0 0.0
        %1228 = vmatprep.subr.mxu0 0.0
        %1229 = vmatpush1.msra.mxu0 0.0
        %1230 = vmatprep.subr.mxu0 0.0
        %1231 = vmatpush1.msra.mxu0 0.0
        %1232 = vmatprep.subr.mxu0 0.0
        %1233 = vmatpush1.msra.mxu0 0.0
        %1234 = vmatprep.subr.mxu0 0.0
        %1235 = vmatpush1.msra.mxu0 0.0
        %1236 = vmatprep.subr.mxu0 0.0
        %1237 = vmatpush1.msra.mxu0 0.0
        %1238 = vmatprep.subr.mxu0 0.0
        %1239 = vmatpush1.msra.mxu0 0.0
        %1240 = vmatprep.subr.mxu0 0.0
        %1241 = vmatpush1.msra.mxu0 0.0
        %1242 = vmatprep.subr.mxu0 0.0
        %1243 = vmatpush1.msra.mxu0 0.0
        %1244 = vmatprep.subr.mxu0 0.0
        %1245 = vmatpush1.msra.mxu0 0.0
        %1246 = vmatprep.subr.mxu0 0.0
        %1247 = vmatpush1.msra.mxu0 0.0
        %1248 = vmatprep.subr.mxu0 0.0
        %1249 = vmatpush1.msra.mxu0 0.0
        %1250 = vmatprep.subr.mxu0 0.0
        %1251 = vmatpush1.msra.mxu0 0.0
        %1252 = vmatprep.subr.mxu0 0.0
        %1253 = vmatpush1.msra.mxu0 0.0
        %1254 = vmatprep.subr.mxu0 0.0
        %1255 = vmatpush1.msra.mxu0 0.0
        %1256 = vmatprep.subr.mxu0 0.0
        %1257 = vmatpush1.msra.mxu0 0.0
        %1258 = vmatprep.subr.mxu0 0.0
        %1259 = vmatpush1.msra.mxu0 0.0
        %1260 = vmatprep.subr.mxu0 0.0
        %1261 = vmatpush1.msra.mxu0 0.0
        %1262 = vmatprep.subr.mxu0 0.0
        %1263 = vmatpush1.msra.mxu0 0.0
        %1264 = vmatprep.subr.mxu0 0.0
        %1265 = vmatpush1.msra.mxu0 0.0
        %1266 = vmatprep.subr.mxu0 0.0
        %1267 = vmatpush1.msra.mxu0 0.0
        %1268 = vmatprep.subr.mxu0 0.0
        %1269 = vmatpush1.msra.mxu0 0.0
        %1270 = vmatprep.subr.mxu0 0.0
        %1271 = vmatpush1.msra.mxu0 0.0
        %1272 = vmatprep.mubr.f32.mxu0 0.0
        %1273 = vmatmul.mubr.f32.gmra.mrb[0].mxu0 %v1206
        %v1274 = vpop.f32.mrb[0].mxu0
        %v1275 = vadd.f32 0.0, %v1274
        %v1276 = vpop.f32.mrb[0].mxu0
        %1277 = vdwg.mxu0
        %1278 = vrot.lane.b32.xlu0 %v834, 96
        %v1279 = vpop.permute.xlu0 %1278
        %1280 = vrot.lane.b32.xlu0 %v836, 96
        %v1281 = vpop.permute.xlu0 %1280
        %v1285 = vsel %vm1150, %v1190, 0
        %1287 = vmatprep.subr.mxu0 0.0
        %1288 = vmatpush1.msra.mxu0 %v1279
        %1289 = vmatprep.subr.mxu0 0.0
        %1290 = vmatpush1.msra.mxu0 %v1281
        %1291 = vmatprep.subr.mxu0 0.0
        %1292 = vmatpush1.msra.mxu0 0.0
        %1293 = vmatprep.subr.mxu0 0.0
        %1294 = vmatpush1.msra.mxu0 0.0
        %1295 = vmatprep.subr.mxu0 0.0
        %1296 = vmatpush1.msra.mxu0 0.0
        %1297 = vmatprep.subr.mxu0 0.0
        %1298 = vmatpush1.msra.mxu0 0.0
        %1299 = vmatprep.subr.mxu0 0.0
        %1300 = vmatpush1.msra.mxu0 0.0
        %1301 = vmatprep.subr.mxu0 0.0
        %1302 = vmatpush1.msra.mxu0 0.0
        %1303 = vmatprep.subr.mxu0 0.0
        %1304 = vmatpush1.msra.mxu0 0.0
        %1305 = vmatprep.subr.mxu0 0.0
        %1306 = vmatpush1.msra.mxu0 0.0
        %1307 = vmatprep.subr.mxu0 0.0
        %1308 = vmatpush1.msra.mxu0 0.0
        %1309 = vmatprep.subr.mxu0 0.0
        %1310 = vmatpush1.msra.mxu0 0.0
        %1311 = vmatprep.subr.mxu0 0.0
        %1312 = vmatpush1.msra.mxu0 0.0
        %1313 = vmatprep.subr.mxu0 0.0
        %1314 = vmatpush1.msra.mxu0 0.0
        %1315 = vmatprep.subr.mxu0 0.0
        %1316 = vmatpush1.msra.mxu0 0.0
        %1317 = vmatprep.subr.mxu0 0.0
        %1318 = vmatpush1.msra.mxu0 0.0
        %1319 = vmatprep.subr.mxu0 0.0
        %1320 = vmatpush1.msra.mxu0 0.0
        %1321 = vmatprep.subr.mxu0 0.0
        %1322 = vmatpush1.msra.mxu0 0.0
        %1323 = vmatprep.subr.mxu0 0.0
        %1324 = vmatpush1.msra.mxu0 0.0
        %1325 = vmatprep.subr.mxu0 0.0
        %1326 = vmatpush1.msra.mxu0 0.0
        %1327 = vmatprep.subr.mxu0 0.0
        %1328 = vmatpush1.msra.mxu0 0.0
        %1329 = vmatprep.subr.mxu0 0.0
        %1330 = vmatpush1.msra.mxu0 0.0
        %1331 = vmatprep.subr.mxu0 0.0
        %1332 = vmatpush1.msra.mxu0 0.0
        %1333 = vmatprep.subr.mxu0 0.0
        %1334 = vmatpush1.msra.mxu0 0.0
        %1335 = vmatprep.subr.mxu0 0.0
        %1336 = vmatpush1.msra.mxu0 0.0
        %1337 = vmatprep.subr.mxu0 0.0
        %1338 = vmatpush1.msra.mxu0 0.0
        %1339 = vmatprep.subr.mxu0 0.0
        %1340 = vmatpush1.msra.mxu0 0.0
        %1341 = vmatprep.subr.mxu0 0.0
        %1342 = vmatpush1.msra.mxu0 0.0
        %1343 = vmatprep.subr.mxu0 0.0
        %1344 = vmatpush1.msra.mxu0 0.0
        %1345 = vmatprep.subr.mxu0 0.0
        %1346 = vmatpush1.msra.mxu0 0.0
        %1347 = vmatprep.subr.mxu0 0.0
        %1348 = vmatpush1.msra.mxu0 0.0
        %1349 = vmatprep.subr.mxu0 0.0
        %1350 = vmatpush1.msra.mxu0 0.0
        %1351 = vmatprep.mubr.f32.mxu0 0.0
        %1352 = vmatmul.mubr.f32.gmra.mrb[0].mxu0 %v1285
        %v1353 = vpop.f32.mrb[0].mxu0
        %v1354 = vadd.f32 0.0, %v1353
        %v1355 = vpop.f32.mrb[0].mxu0
        %1356 = vdwg.mxu0
        %1357 = vrot.lane.b32.xlu0 %v838, 96
        %v1358 = vpop.permute.xlu0 %1357
        %1359 = vrot.lane.b32.xlu0 %v840, 96
        %v1360 = vpop.permute.xlu0 %1359
        %v1364 = vsel %vm1150, %v1192, 0
        %1366 = vmatprep.subr.mxu0 0.0
        %1367 = vmatpush1.msra.mxu0 %v1358
        %1368 = vmatprep.subr.mxu0 0.0
        %1369 = vmatpush1.msra.mxu0 %v1360
        %1370 = vmatprep.subr.mxu0 0.0
        %1371 = vmatpush1.msra.mxu0 0.0
        %1372 = vmatprep.subr.mxu0 0.0
        %1373 = vmatpush1.msra.mxu0 0.0
        %1374 = vmatprep.subr.mxu0 0.0
        %1375 = vmatpush1.msra.mxu0 0.0
        %1376 = vmatprep.subr.mxu0 0.0
        %1377 = vmatpush1.msra.mxu0 0.0
        %1378 = vmatprep.subr.mxu0 0.0
        %1379 = vmatpush1.msra.mxu0 0.0
        %1380 = vmatprep.subr.mxu0 0.0
        %1381 = vmatpush1.msra.mxu0 0.0
        %1382 = vmatprep.subr.mxu0 0.0
        %1383 = vmatpush1.msra.mxu0 0.0
        %1384 = vmatprep.subr.mxu0 0.0
        %1385 = vmatpush1.msra.mxu0 0.0
        %1386 = vmatprep.subr.mxu0 0.0
        %1387 = vmatpush1.msra.mxu0 0.0
        %1388 = vmatprep.subr.mxu0 0.0
        %1389 = vmatpush1.msra.mxu0 0.0
        %1390 = vmatprep.subr.mxu0 0.0
        %1391 = vmatpush1.msra.mxu0 0.0
        %1392 = vmatprep.subr.mxu0 0.0
        %1393 = vmatpush1.msra.mxu0 0.0
        %1394 = vmatprep.subr.mxu0 0.0
        %1395 = vmatpush1.msra.mxu0 0.0
        %1396 = vmatprep.subr.mxu0 0.0
        %1397 = vmatpush1.msra.mxu0 0.0
        %1398 = vmatprep.subr.mxu0 0.0
        %1399 = vmatpush1.msra.mxu0 0.0
        %1400 = vmatprep.subr.mxu0 0.0
        %1401 = vmatpush1.msra.mxu0 0.0
        %1402 = vmatprep.subr.mxu0 0.0
        %1403 = vmatpush1.msra.mxu0 0.0
        %1404 = vmatprep.subr.mxu0 0.0
        %1405 = vmatpush1.msra.mxu0 0.0
        %1406 = vmatprep.subr.mxu0 0.0
        %1407 = vmatpush1.msra.mxu0 0.0
        %1408 = vmatprep.subr.mxu0 0.0
        %1409 = vmatpush1.msra.mxu0 0.0
        %1410 = vmatprep.subr.mxu0 0.0
        %1411 = vmatpush1.msra.mxu0 0.0
        %1412 = vmatprep.subr.mxu0 0.0
        %1413 = vmatpush1.msra.mxu0 0.0
        %1414 = vmatprep.subr.mxu0 0.0
        %1415 = vmatpush1.msra.mxu0 0.0
        %1416 = vmatprep.subr.mxu0 0.0
        %1417 = vmatpush1.msra.mxu0 0.0
        %1418 = vmatprep.subr.mxu0 0.0
        %1419 = vmatpush1.msra.mxu0 0.0
        %1420 = vmatprep.subr.mxu0 0.0
        %1421 = vmatpush1.msra.mxu0 0.0
        %1422 = vmatprep.subr.mxu0 0.0
        %1423 = vmatpush1.msra.mxu0 0.0
        %1424 = vmatprep.subr.mxu0 0.0
        %1425 = vmatpush1.msra.mxu0 0.0
        %1426 = vmatprep.subr.mxu0 0.0
        %1427 = vmatpush1.msra.mxu0 0.0
        %1428 = vmatprep.subr.mxu0 0.0
        %1429 = vmatpush1.msra.mxu0 0.0
        %1430 = vmatprep.mubr.f32.mxu0 0.0
        %1431 = vmatmul.mubr.f32.gmra.mrb[0].mxu0 %v1364
        %v1432 = vpop.f32.mrb[0].mxu0
        %v1433 = vadd.f32 0.0, %v1432
        %v1434 = vpop.f32.mrb[0].mxu0
        %1435 = vdwg.mxu0
        %1436 = vrot.lane.b32.xlu0 %v842, 96
        %v1437 = vpop.permute.xlu0 %1436
        %1438 = vrot.lane.b32.xlu0 %v844, 96
        %v1439 = vpop.permute.xlu0 %1438
        %v1443 = vsel %vm1150, %v1194, 0
        %1445 = vmatprep.subr.mxu0 0.0
        %1446 = vmatpush1.msra.mxu0 %v1437
        %1447 = vmatprep.subr.mxu0 0.0
        %1448 = vmatpush1.msra.mxu0 %v1439
        %1449 = vmatprep.subr.mxu0 0.0
        %1450 = vmatpush1.msra.mxu0 0.0
        %1451 = vmatprep.subr.mxu0 0.0
        %1452 = vmatpush1.msra.mxu0 0.0
        %1453 = vmatprep.subr.mxu0 0.0
        %1454 = vmatpush1.msra.mxu0 0.0
        %1455 = vmatprep.subr.mxu0 0.0
        %1456 = vmatpush1.msra.mxu0 0.0
        %1457 = vmatprep.subr.mxu0 0.0
        %1458 = vmatpush1.msra.mxu0 0.0
        %1459 = vmatprep.subr.mxu0 0.0
        %1460 = vmatpush1.msra.mxu0 0.0
        %1461 = vmatprep.subr.mxu0 0.0
        %1462 = vmatpush1.msra.mxu0 0.0
        %1463 = vmatprep.subr.mxu0 0.0
        %1464 = vmatpush1.msra.mxu0 0.0
        %1465 = vmatprep.subr.mxu0 0.0
        %1466 = vmatpush1.msra.mxu0 0.0
        %1467 = vmatprep.subr.mxu0 0.0
        %1468 = vmatpush1.msra.mxu0 0.0
        %1469 = vmatprep.subr.mxu0 0.0
        %1470 = vmatpush1.msra.mxu0 0.0
        %1471 = vmatprep.subr.mxu0 0.0
        %1472 = vmatpush1.msra.mxu0 0.0
        %1473 = vmatprep.subr.mxu0 0.0
        %1474 = vmatpush1.msra.mxu0 0.0
        %1475 = vmatprep.subr.mxu0 0.0
        %1476 = vmatpush1.msra.mxu0 0.0
        %1477 = vmatprep.subr.mxu0 0.0
        %1478 = vmatpush1.msra.mxu0 0.0
        %1479 = vmatprep.subr.mxu0 0.0
        %1480 = vmatpush1.msra.mxu0 0.0
        %1481 = vmatprep.subr.mxu0 0.0
        %1482 = vmatpush1.msra.mxu0 0.0
        %1483 = vmatprep.subr.mxu0 0.0
        %1484 = vmatpush1.msra.mxu0 0.0
        %1485 = vmatprep.subr.mxu0 0.0
        %1486 = vmatpush1.msra.mxu0 0.0
        %1487 = vmatprep.subr.mxu0 0.0
        %1488 = vmatpush1.msra.mxu0 0.0
        %1489 = vmatprep.subr.mxu0 0.0
        %1490 = vmatpush1.msra.mxu0 0.0
        %1491 = vmatprep.subr.mxu0 0.0
        %1492 = vmatpush1.msra.mxu0 0.0
        %1493 = vmatprep.subr.mxu0 0.0
        %1494 = vmatpush1.msra.mxu0 0.0
        %1495 = vmatprep.subr.mxu0 0.0
        %1496 = vmatpush1.msra.mxu0 0.0
        %1497 = vmatprep.subr.mxu0 0.0
        %1498 = vmatpush1.msra.mxu0 0.0
        %1499 = vmatprep.subr.mxu0 0.0
        %1500 = vmatpush1.msra.mxu0 0.0
        %1501 = vmatprep.subr.mxu0 0.0
        %1502 = vmatpush1.msra.mxu0 0.0
        %1503 = vmatprep.subr.mxu0 0.0
        %1504 = vmatpush1.msra.mxu0 0.0
        %1505 = vmatprep.subr.mxu0 0.0
        %1506 = vmatpush1.msra.mxu0 0.0
        %1507 = vmatprep.subr.mxu0 0.0
        %1508 = vmatpush1.msra.mxu0 0.0
        %1509 = vmatprep.mubr.f32.mxu0 0.0
        %1510 = vmatmul.mubr.f32.gmra.mrb[0].mxu0 %v1443
        %v1511 = vpop.f32.mrb[0].mxu0
        %v1512 = vadd.f32 0.0, %v1511
        %v1513 = vpop.f32.mrb[0].mxu0
        %1514 = vdwg.mxu0
        %1516 = vrot.lane.b32.xlu0 %v1354, 8
        %v1517 = vpop.permute.xlu0 %1516
        %1520 = vrot.lane.b32.xlu0 %v1433, 16
        %v1521 = vpop.permute.xlu0 %1520
        %1524 = vrot.lane.b32.xlu0 %v1512, 24
        %v1525 = vpop.permute.xlu0 %1524
        %v1527 = vsel %vm845, %v1275, %v1517
        %v1528 = vsel %vm1150, %v1527, %v1521
        %vm1529 = vcmask 195584
        %v1530 = vsel %vm1529, %v1528, %v1525
        %v1531 = vld [vmem:[#allocation5] sm:$0xff]
        %v1532 = vld [vmem:[#allocation5 + $0x8] sm:$0xff]
        %v1533 = vld [vmem:[#allocation5 + $0x10] sm:$0xff]
        %v1534 = vld [vmem:[#allocation5 + $0x18] sm:$0xff]
        %v1535 = vld [vmem:[%s7] sm:$0x1]
        %v1537 = vlaneseq
        %v1538 = vshrl.u32 %v1537, 7
        %v1539 = vsub.s32 0, %v1538
        %v1540 = vrot.slane %v1535, %v1539
        %v1543 = vsel %vm657, %v1530, 0
        %1545 = vmatprep.subr.mxu0 0.0
        %1546 = vmatpush1.msra.mxu0 %v1531
        %1547 = vmatprep.subr.mxu0 0.0
        %1548 = vmatpush1.msra.mxu0 %v1532
        %1549 = vmatprep.subr.mxu0 0.0
        %1550 = vmatpush1.msra.mxu0 %v1533
        %1551 = vmatprep.subr.mxu0 0.0
        %1552 = vmatpush1.msra.mxu0 %v1534
        %1553 = vmatprep.subr.mxu0 0.0
        %1554 = vmatpush1.msra.mxu0 0.0
        %1555 = vmatprep.subr.mxu0 0.0
        %1556 = vmatpush1.msra.mxu0 0.0
        %1557 = vmatprep.subr.mxu0 0.0
        %1558 = vmatpush1.msra.mxu0 0.0
        %1559 = vmatprep.subr.mxu0 0.0
        %1560 = vmatpush1.msra.mxu0 0.0
        %1561 = vmatprep.subr.mxu0 0.0
        %1562 = vmatpush1.msra.mxu0 0.0
        %1563 = vmatprep.subr.mxu0 0.0
        %1564 = vmatpush1.msra.mxu0 0.0
        %1565 = vmatprep.subr.mxu0 0.0
        %1566 = vmatpush1.msra.mxu0 0.0
        %1567 = vmatprep.subr.mxu0 0.0
        %1568 = vmatpush1.msra.mxu0 0.0
        %1569 = vmatprep.subr.mxu0 0.0
        %1570 = vmatpush1.msra.mxu0 0.0
        %1571 = vmatprep.subr.mxu0 0.0
        %1572 = vmatpush1.msra.mxu0 0.0
        %1573 = vmatprep.subr.mxu0 0.0
        %1574 = vmatpush1.msra.mxu0 0.0
        %1575 = vmatprep.subr.mxu0 0.0
        %1576 = vmatpush1.msra.mxu0 0.0
        %1577 = vmatprep.subr.mxu0 0.0
        %1578 = vmatpush1.msra.mxu0 0.0
        %1579 = vmatprep.subr.mxu0 0.0
        %1580 = vmatpush1.msra.mxu0 0.0
        %1581 = vmatprep.subr.mxu0 0.0
        %1582 = vmatpush1.msra.mxu0 0.0
        %1583 = vmatprep.subr.mxu0 0.0
        %1584 = vmatpush1.msra.mxu0 0.0
        %1585 = vmatprep.subr.mxu0 0.0
        %1586 = vmatpush1.msra.mxu0 0.0
        %1587 = vmatprep.subr.mxu0 0.0
        %1588 = vmatpush1.msra.mxu0 0.0
        %1589 = vmatprep.subr.mxu0 0.0
        %1590 = vmatpush1.msra.mxu0 0.0
        %1591 = vmatprep.subr.mxu0 0.0
        %1592 = vmatpush1.msra.mxu0 0.0
        %1593 = vmatprep.subr.mxu0 0.0
        %1594 = vmatpush1.msra.mxu0 0.0
        %1595 = vmatprep.subr.mxu0 0.0
        %1596 = vmatpush1.msra.mxu0 0.0
        %1597 = vmatprep.subr.mxu0 0.0
        %1598 = vmatpush1.msra.mxu0 0.0
        %1599 = vmatprep.subr.mxu0 0.0
        %1600 = vmatpush1.msra.mxu0 0.0
        %1601 = vmatprep.subr.mxu0 0.0
        %1602 = vmatpush1.msra.mxu0 0.0
        %1603 = vmatprep.subr.mxu0 0.0
        %1604 = vmatpush1.msra.mxu0 0.0
        %1605 = vmatprep.subr.mxu0 0.0
        %1606 = vmatpush1.msra.mxu0 0.0
        %1607 = vmatprep.subr.mxu0 0.0
        %1608 = vmatpush1.msra.mxu0 0.0
        %1609 = vmatprep.mubr.f32.mxu0 0.0
        %1610 = vmatmul.mubr.f32.gmra.mrb[0].mxu0 %v1543
        %v1611 = vpop.f32.mrb[0].mxu0
        %v1612 = vadd.f32 %v1540, %v1611
        %v1613 = vpop.f32.mrb[0].mxu0
        %1614 = vdwg.mxu0
        %v1615 = vadd.f32 %v1612, %v643
        %v1616 = vld [vmem:[%s8] sm:$0x1]
        %v1617 = vld [vmem:[%s9] sm:$0x1]
        %v1618 = vsel %vm657, %v1615, 0.0
        %1619 = vadd.xlane.f32.xlu0 %v1618
        %v1620 = vpop.xlane.xlu0 %1619
        %v1621 = vrcp.pop 32.0
        %v1622 = vmul.f32 %v1620, %v1621
        %v1623 = vsub.f32 %v1615, %v1622
        %v1624 = vmul.f32 %v1623, %v1623
        %v1625 = vsel %vm657, %v1624, 0.0
        %1626 = vadd.xlane.f32.xlu0 %v1625
        %v1627 = vpop.xlane.xlu0 %1626
        %v1628 = vmul.f32 %v1627, %v1621
        %v1629 = vadd.f32 %v1628, 1e-05
        %v1630 = vrsqrt.pop %v1629
        %v1631 = vmul.f32 %v1623, %v1630
        %v1633 = vlaneseq
        %v1634 = vshrl.u32 %v1633, 7
        %v1635 = vsub.s32 0, %v1634
        %v1636 = vrot.slane %v1616, %v1635
        %v1638 = vmul.f32 %v1631, %v1636
        %v1640 = vlaneseq
        %v1641 = vshrl.u32 %v1640, 7
        %v1642 = vsub.s32 0, %v1641
        %v1643 = vrot.slane %v1617, %v1642
        %v1645 = vadd.f32 %v1638, %v1643
        %v1646 = vld [vmem:[#allocation7] sm:$0xff]
        %v1647 = vld [vmem:[#allocation7 + $0x8] sm:$0xff]
        %v1648 = vld [vmem:[#allocation7 + $0x10] sm:$0xff]
        %v1649 = vld [vmem:[#allocation7 + $0x18] sm:$0xff]
        %v1650 = vld [vmem:[%s11] sm:$0x1]
        %v1652 = vlaneseq
        %v1653 = vshrl.u32 %v1652, 7
        %v1654 = vsub.s32 0, %v1653
        %v1655 = vrot.slane %v1650, %v1654
        %v1658 = vsel %vm657, %v1645, 0
        %1660 = vmatprep.subr.mxu0 0.0
        %1661 = vmatpush1.msra.mxu0 %v1646
        %1662 = vmatprep.subr.mxu0 0.0
        %1663 = vmatpush1.msra.mxu0 %v1647
        %1664 = vmatprep.subr.mxu0 0.0
        %1665 = vmatpush1.msra.mxu0 %v1648
        %1666 = vmatprep.subr.mxu0 0.0
        %1667 = vmatpush1.msra.mxu0 %v1649
        %1668 = vmatprep.subr.mxu0 0.0
        %1669 = vmatpush1.msra.mxu0 0.0
        %1670 = vmatprep.subr.mxu0 0.0
        %1671 = vmatpush1.msra.mxu0 0.0
        %1672 = vmatprep.subr.mxu0 0.0
        %1673 = vmatpush1.msra.mxu0 0.0
        %1674 = vmatprep.subr.mxu0 0.0
        %1675 = vmatpush1.msra.mxu0 0.0
        %1676 = vmatprep.subr.mxu0 0.0
        %1677 = vmatpush1.msra.mxu0 0.0
        %1678 = vmatprep.subr.mxu0 0.0
        %1679 = vmatpush1.msra.mxu0 0.0
        %1680 = vmatprep.subr.mxu0 0.0
        %1681 = vmatpush1.msra.mxu0 0.0
        %1682 = vmatprep.subr.mxu0 0.0
        %1683 = vmatpush1.msra.mxu0 0.0
        %1684 = vmatprep.subr.mxu0 0.0
        %1685 = vmatpush1.msra.mxu0 0.0
        %1686 = vmatprep.subr.mxu0 0.0
        %1687 = vmatpush1.msra.mxu0 0.0
        %1688 = vmatprep.subr.mxu0 0.0
        %1689 = vmatpush1.msra.mxu0 0.0
        %1690 = vmatprep.subr.mxu0 0.0
        %1691 = vmatpush1.msra.mxu0 0.0
        %1692 = vmatprep.subr.mxu0 0.0
        %1693 = vmatpush1.msra.mxu0 0.0
        %1694 = vmatprep.subr.mxu0 0.0
        %1695 = vmatpush1.msra.mxu0 0.0
        %1696 = vmatprep.subr.mxu0 0.0
        %1697 = vmatpush1.msra.mxu0 0.0
        %1698 = vmatprep.subr.mxu0 0.0
        %1699 = vmatpush1.msra.mxu0 0.0
        %1700 = vmatprep.subr.mxu0 0.0
        %1701 = vmatpush1.msra.mxu0 0.0
        %1702 = vmatprep.subr.mxu0 0.0
        %1703 = vmatpush1.msra.mxu0 0.0
        %1704 = vmatprep.subr.mxu0 0.0
        %1705 = vmatpush1.msra.mxu0 0.0
        %1706 = vmatprep.subr.mxu0 0.0
        %1707 = vmatpush1.msra.mxu0 0.0
        %1708 = vmatprep.subr.mxu0 0.0
        %1709 = vmatpush1.msra.mxu0 0.0
        %1710 = vmatprep.subr.mxu0 0.0
        %1711 = vmatpush1.msra.mxu0 0.0
        %1712 = vmatprep.subr.mxu0 0.0
        %1713 = vmatpush1.msra.mxu0 0.0
        %1714 = vmatprep.subr.mxu0 0.0
        %1715 = vmatpush1.msra.mxu0 0.0
        %1716 = vmatprep.subr.mxu0 0.0
        %1717 = vmatpush1.msra.mxu0 0.0
        %1718 = vmatprep.subr.mxu0 0.0
        %1719 = vmatpush1.msra.mxu0 0.0
        %1720 = vmatprep.subr.mxu0 0.0
        %1721 = vmatpush1.msra.mxu0 0.0
        %1722 = vmatprep.subr.mxu0 0.0
        %1723 = vmatpush1.msra.mxu0 0.0
        %1724 = vmatprep.mubr.f32.mxu0 0.0
        %1725 = vmatmul.mubr.f32.gmra.mrb[0].mxu0 %v1658
        %v1726 = vpop.f32.mrb[0].mxu0
        %v1727 = vadd.f32 %v1655, %v1726
        %v1728 = vpop.f32.mrb[0].mxu0
        %1729 = vdwg.mxu0
        %v1730 = vmax.f32 %v1727, 0.0
        %v1731 = vld [vmem:[%s12] sm:$0xff]
        %v1732 = vld [vmem:[%s12 + $0x8] sm:$0xff]
        %v1733 = vld [vmem:[%s12 + $0x10] sm:$0xff]
        %v1734 = vld [vmem:[%s12 + $0x18] sm:$0xff]
        %v1735 = vld [vmem:[%s12 + $0x20] sm:$0xff]
        %v1736 = vld [vmem:[%s12 + $0x28] sm:$0xff]
        %v1737 = vld [vmem:[%s12 + $0x30] sm:$0xff]
        %v1738 = vld [vmem:[%s12 + $0x38] sm:$0xff]
        %v1739 = vld [vmem:[%s13] sm:$0x1]
        %v1741 = vlaneseq
        %v1742 = vshrl.u32 %v1741, 7
        %v1743 = vsub.s32 0, %v1742
        %v1744 = vrot.slane %v1739, %v1743
        %vm1746 = vcmask 523264
        %v1748 = vsel %vm1746, %v1730, 0
        %1750 = vmatprep.subr.mxu0 0.0
        %1751 = vmatpush1.msra.mxu0 %v1731
        %1752 = vmatprep.subr.mxu0 0.0
        %1753 = vmatpush1.msra.mxu0 %v1732
        %1754 = vmatprep.subr.mxu0 0.0
        %1755 = vmatpush1.msra.mxu0 %v1733
        %1756 = vmatprep.subr.mxu0 0.0
        %1757 = vmatpush1.msra.mxu0 %v1734
        %1758 = vmatprep.subr.mxu0 0.0
        %1759 = vmatpush1.msra.mxu0 %v1735
        %1760 = vmatprep.subr.mxu0 0.0
        %1761 = vmatpush1.msra.mxu0 %v1736
        %1762 = vmatprep.subr.mxu0 0.0
        %1763 = vmatpush1.msra.mxu0 %v1737
        %1764 = vmatprep.subr.mxu0 0.0
        %1765 = vmatpush1.msra.mxu0 %v1738
        %1766 = vmatprep.subr.mxu0 0.0
        %1767 = vmatpush1.msra.mxu0 0.0
        %1768 = vmatprep.subr.mxu0 0.0
        %1769 = vmatpush1.msra.mxu0 0.0
        %1770 = vmatprep.subr.mxu0 0.0
        %1771 = vmatpush1.msra.mxu0 0.0
        %1772 = vmatprep.subr.mxu0 0.0
        %1773 = vmatpush1.msra.mxu0 0.0
        %1774 = vmatprep.subr.mxu0 0.0
        %1775 = vmatpush1.msra.mxu0 0.0
        %1776 = vmatprep.subr.mxu0 0.0
        %1777 = vmatpush1.msra.mxu0 0.0
        %1778 = vmatprep.subr.mxu0 0.0
        %1779 = vmatpush1.msra.mxu0 0.0
        %1780 = vmatprep.subr.mxu0 0.0
        %1781 = vmatpush1.msra.mxu0 0.0
        %1782 = vmatprep.subr.mxu0 0.0
        %1783 = vmatpush1.msra.mxu0 0.0
        %1784 = vmatprep.subr.mxu0 0.0
        %1785 = vmatpush1.msra.mxu0 0.0
        %1786 = vmatprep.subr.mxu0 0.0
        %1787 = vmatpush1.msra.mxu0 0.0
        %1788 = vmatprep.subr.mxu0 0.0
        %1789 = vmatpush1.msra.mxu0 0.0
        %1790 = vmatprep.subr.mxu0 0.0
        %1791 = vmatpush1.msra.mxu0 0.0
        %1792 = vmatprep.subr.mxu0 0.0
        %1793 = vmatpush1.msra.mxu0 0.0
        %1794 = vmatprep.subr.mxu0 0.0
        %1795 = vmatpush1.msra.mxu0 0.0
        %1796 = vmatprep.subr.mxu0 0.0
        %1797 = vmatpush1.msra.mxu0 0.0
        %1798 = vmatprep.subr.mxu0 0.0
        %1799 = vmatpush1.msra.mxu0 0.0
        %1800 = vmatprep.subr.mxu0 0.0
        %1801 = vmatpush1.msra.mxu0 0.0
        %1802 = vmatprep.subr.mxu0 0.0
        %1803 = vmatpush1.msra.mxu0 0.0
        %1804 = vmatprep.subr.mxu0 0.0
        %1805 = vmatpush1.msra.mxu0 0.0
        %1806 = vmatprep.subr.mxu0 0.0
        %1807 = vmatpush1.msra.mxu0 0.0
        %1808 = vmatprep.subr.mxu0 0.0
        %1809 = vmatpush1.msra.mxu0 0.0
        %1810 = vmatprep.subr.mxu0 0.0
        %1811 = vmatpush1.msra.mxu0 0.0
        %1812 = vmatprep.subr.mxu0 0.0
        %1813 = vmatpush1.msra.mxu0 0.0
        %1814 = vmatprep.mubr.f32.mxu0 0.0
        %1815 = vmatmul.mubr.f32.gmra.mrb[0].mxu0 %v1748
        %v1816 = vpop.f32.mrb[0].mxu0
        %v1817 = vadd.f32 %v1744, %v1816
        %v1818 = vpop.f32.mrb[0].mxu0
        %1819 = vdwg.mxu0
        %v1820 = vadd.f32 %v1645, %v1817
        %v1821 = vld [vmem:[%s14] sm:$0x1]
        %v1822 = vld [vmem:[%s15] sm:$0x1]
        %v1823 = vsel %vm657, %v1820, 0.0
        %1824 = vadd.xlane.f32.xlu0 %v1823
        %v1825 = vpop.xlane.xlu0 %1824
        %v1826 = vmul.f32 %v1825, %v1621
        %v1827 = vsub.f32 %v1820, %v1826
        %v1828 = vmul.f32 %v1827, %v1827
        %v1829 = vsel %vm657, %v1828, 0.0
        %1830 = vadd.xlane.f32.xlu0 %v1829
        %v1831 = vpop.xlane.xlu0 %1830
        %v1832 = vmul.f32 %v1831, %v1621
        %v1833 = vadd.f32 %v1832, 1e-05
        %v1834 = vrsqrt.pop %v1833
        %v1835 = vmul.f32 %v1827, %v1834
        %v1837 = vlaneseq
        %v1838 = vshrl.u32 %v1837, 7
        %v1839 = vsub.s32 0, %v1838
        %v1840 = vrot.slane %v1821, %v1839
        %v1842 = vmul.f32 %v1835, %v1840
        %v1844 = vlaneseq
        %v1845 = vshrl.u32 %v1844, 7
        %v1846 = vsub.s32 0, %v1845
        %v1847 = vrot.slane %v1822, %v1846
        %v1849 = vadd.f32 %v1842, %v1847
        %1850 = vst.msk [vmem:[%s630] sm:$0xff] %vm657, %v1849
        %s1851 = sand.u32 %s409, 1
        %s1852 = scalar_lea.sflag [#allocation4], %s1851
        %s1853 = sand.u32 %s409, 1
        %s1854 = smul.addr %s1853, 8
        %s1855 = scalar_lea.vmem [#allocation8], %s1854
        %s1856 = sand.u32 %s437, 1
        %s1857 = scalar_lea.sflag [#allocation10], %s1856
        %s1858 = sand.u32 %s437, 1
        %s1859 = smul.addr %s1858, 32
        %s1860 = scalar_lea.vmem [#allocation9], %s1859
        // Predicated region
        $region97: #{tpu_custom_call.1} parent=83 // pred_check
          %p1861 = pneg %p419
        $region98: #{tpu_custom_call.1} parent=83 // pred_check_branch
          %1863 = sbr.rel (%p1861) target = $region100
        $region99: #{tpu_custom_call.1} parent=83 // pred_region
          %s1865 = ssub.s32 128, 128
          %1866 = vsyncadd %s1852, %s1865
          %s1867 = sadd.s32 %s44, %s43
          %s1868 = smul.addr %s1867, 128
          %s1869 = scalar_lea.hbm %s16, %s1868
          %s1871 = sshll.u32 %s1855, 4
          %s1872 = int_to_ptr.vmem [resolvable:$true] %s1871
          %1874 = dma.vmem_to_hbm [thread:$0]  %s1872, 128, %s1869, %s1852
        $region100: #{tpu_custom_call.1} parent=83 // pred_fallthru
          _
        // Predicated region
        $region101: #{tpu_custom_call.1} parent=83 // pred_check
          %p1875 = pneg %p447
        $region102: #{tpu_custom_call.1} parent=83 // pred_check_branch
          %1877 = sbr.rel (%p1875) target = $region104
        $region103: #{tpu_custom_call.1} parent=83 // pred_region
          %s1879 = ssub.s32 512, 512
          %1880 = vsyncadd %s1857, %s1879
          %s1881 = smul.addr %s43, 4
          %s1882 = sadd.s32 %s44, %s1881
          %s1883 = smul.addr %s1882, 128
          %s1884 = scalar_lea.hbm %s17, %s1883
          %s1885 = sshll.u32 %s1860, 4
          %s1886 = int_to_ptr.vmem [resolvable:$true] %s1885
          %1891 = dma.vmem_to_hbm [thread:$0]  %s1886, 512, %s1884, %s1857, 128, 128, 8
        $region104: #{tpu_custom_call.1} parent=83 // pred_fallthru
          _
      $region84: #{tpu_custom_call.1} parent=5 // pred_fallthru
        _
      %p1892 = scmp.le.s32.totalorder 2, %s34
      // Predicated region
      $region105: #{tpu_custom_call.1} parent=5 // pred_check
        %p1893 = pneg %p1892
      $region106: #{tpu_custom_call.1} parent=5 // pred_check_branch
        %1895 = sbr.rel (%p1893) target = $region108
      $region107: #{tpu_custom_call.1} parent=5 // pred_region
        %s1896 = ssub.s32 %s34, 2
        // Predicated region
        $region109: #{tpu_custom_call.1} parent=107 // pred_check
          %p1897 = pneg %p425
        $region110: #{tpu_custom_call.1} parent=107 // pred_check_branch
          %1899 = sbr.rel (%p1897) target = $region112
        $region111: #{tpu_custom_call.1} parent=107 // pred_region
          %s1900 = sand.u32 %s410, 1
          %s1901 = scalar_lea.sflag [#allocation4], %s1900
          %s1902 = sand.u32 %s410, 1
          %s1903 = smul.addr %s1902, 8
          %s1904 = scalar_lea.vmem [#allocation8], %s1903
          %1905 = dma.done %s1901, 128
        $region112: #{tpu_custom_call.1} parent=107 // pred_fallthru
          _
        // Predicated region
        $region113: #{tpu_custom_call.1} parent=107 // pred_check
          %p1906 = pneg %p453
        $region114: #{tpu_custom_call.1} parent=107 // pred_check_branch
          %1908 = sbr.rel (%p1906) target = $region116
        $region115: #{tpu_custom_call.1} parent=107 // pred_region
          %s1909 = sand.u32 %s438, 1
          %s1910 = scalar_lea.sflag [#allocation10], %s1909
          %s1911 = sand.u32 %s438, 1
          %s1912 = smul.addr %s1911, 32
          %s1913 = scalar_lea.vmem [#allocation9], %s1912
          %1914 = dma.done %s1910, 512
        $region116: #{tpu_custom_call.1} parent=107 // pred_fallthru
          _
      $region108: #{tpu_custom_call.1} parent=5 // pred_fallthru
        _
    $region6: #{tpu_custom_call.1} parent=1 // loop_footer
      %s38 = sadd.s32 1, %s34
    $region7: #{tpu_custom_call.1} parent=1 // loop_footer_branch
      %33 = sbr.rel target = $region3
    $region8: #{tpu_custom_call.1} parent=1 // loop_exit
      _
    %1915 = vsyncpa [#allocation3], 1
    %s1916 = scalar_lea.sflag [#allocation3], 1
    %1917 = vsyncpa %s1916, 1
    %1918 = vsyncpa [#allocation6], 1
    %1919 = vsyncpa [#allocation4], 1
    %s1920 = scalar_lea.sflag [#allocation4], 1
    %1921 = vsyncpa %s1920, 1
    %1922 = vsyncpa [#allocation10], 1
    %s1923 = scalar_lea.sflag [#allocation10], 1
    %1924 = vsyncpa %s1923, 1

</llo_original>
